<compile_context>
chip_gen: v5e
topology: v5e:2x2
jax: 0.10.0
libtpu: 0.0.40
codegen_flags: <defaults>
</compile_context>

<pallas_src>
import math

import jax
import jax.numpy as jnp
from jax.experimental import pallas as pl
from jax.experimental.pallas import tpu as pltpu

# Small-model hyperparameters (stand-in for BERT-large covid-twitter-bert-v2).
B = 2            # batch (per input pair)
S = 8            # sequence length
H = 128          # hidden size (stands in for 1024)
NUM_HEADS = 4
HEAD_DIM = H // NUM_HEADS
INTER = 256      # FFN intermediate size
VOCAB = 100
NUM_LAYERS = 2
LN_EPS = 1e-12


def _layernorm(x, gamma, beta, eps=LN_EPS):
    mu = jnp.mean(x, axis=-1, keepdims=True)
    xc = x - mu
    var = jnp.mean(xc * xc, axis=-1, keepdims=True)
    return xc * jax.lax.rsqrt(var + eps) * gamma + beta


# --------------------------- Pallas kernels ---------------------------------

def encoder_kernel(x_ref, mb_ref, eg_ref, eb_ref,
                   wq_ref, bq_ref, wk_ref, bk_ref, wv_ref, bv_ref,
                   wo_ref, bo_ref, g1_ref, b1_ref,
                   wi_ref, bi_ref, wo2_ref, bo2_ref, g2_ref, b2_ref,
                   o_ref):
    """One (batch-element, layer) grid step of the BERT encoder.

    grid = (batch, layer). The output block (indexed by batch only) stays
    resident in VMEM across the inner "arbitrary" layer axis and carries the
    activation. Layer 0 additionally applies the embedding LayerNorm.
    """
    layer = pl.program_id(1)

    @pl.when(layer == 0)
    def _():
        # Fused embedding LayerNorm initialises the resident activation.
        o_ref[0] = _layernorm(x_ref[0], eg_ref[...], eb_ref[...])

    x = o_ref[0]                   # (S, H) f32 activation carry
    mask_bias = mb_ref[0]          # (1, S) additive attention-mask bias

    xb = x.astype(jnp.bfloat16)
    q = jnp.dot(xb, wq_ref[0], preferred_element_type=jnp.float32) + bq_ref[0]
    k = jnp.dot(xb, wk_ref[0], preferred_element_type=jnp.float32) + bk_ref[0]
    v = jnp.dot(xb, wv_ref[0], preferred_element_type=jnp.float32) + bv_ref[0]

    scale = 1.0 / math.sqrt(HEAD_DIM)
    ctx_heads = []
    for h in range(NUM_HEADS):
        sl = slice(h * HEAD_DIM, (h + 1) * HEAD_DIM)
        qh = (q[:, sl] * scale).astype(jnp.bfloat16)
        kh = k[:, sl].astype(jnp.bfloat16)
        vh = v[:, sl].astype(jnp.bfloat16)
        # scores: (S, S) = qh @ kh^T (contract head_dim, no explicit transpose)
        s = jax.lax.dot_general(qh, kh, (((1,), (1,)), ((), ())),
                                preferred_element_type=jnp.float32)
        s = s + mask_bias                          # broadcast over query rows
        s = s - jnp.max(s, axis=-1, keepdims=True)
        p = jnp.exp(s)
        p = p * pl.reciprocal(jnp.sum(p, axis=-1, keepdims=True), approx=True)
        ctx_heads.append(jnp.dot(p.astype(jnp.bfloat16), vh,
                                 preferred_element_type=jnp.float32))
    # Per-head contexts stay in registers; one lane-dense (S, H) value.
    ctx = jnp.concatenate(ctx_heads, axis=-1)

    attn = jnp.dot(ctx.astype(jnp.bfloat16), wo_ref[0],
                   preferred_element_type=jnp.float32) + bo_ref[0]
    x1 = _layernorm(x + attn, g1_ref[0], b1_ref[0])

    hmid = jnp.dot(x1.astype(jnp.bfloat16), wi_ref[0],
                   preferred_element_type=jnp.float32) + bi_ref[0]
    # TODO(synk): HF BERT uses exact erf-GELU; tanh-approx GELU used here.
    hmid = jax.nn.gelu(hmid, approximate=True)
    ffn = jnp.dot(hmid.astype(jnp.bfloat16), wo2_ref[0],
                  preferred_element_type=jnp.float32) + bo2_ref[0]
    o_ref[0] = _layernorm(x1 + ffn, g2_ref[0], b2_ref[0])


def pool_mix_classify_kernel(beta_ref, cls_ref, wp_ref, bp_ref, wc_ref, bc_ref,
                             mixed_ref, logits_ref):
    beta = beta_ref[0, 0]
    # One stacked pooler matmul + tanh over the (2B, H) [CLS] states.
    pooled = jnp.tanh(
        jnp.dot(cls_ref[...].astype(jnp.bfloat16), wp_ref[...],
                preferred_element_type=jnp.float32) + bp_ref[...])
    p1 = pooled[:B]                  # pooler_output for inputs 1
    p2 = pooled[B:]                  # pooler_output for inputs 2
    mixed = beta * p1 + (1.0 - beta) * p2
    mixed_ref[...] = mixed
    # dropout_prob = 0  ->  dropout is the identity
    logits_ref[...] = jnp.dot(mixed.astype(jnp.bfloat16), wc_ref[...],
                              preferred_element_type=jnp.float32) + bc_ref[...]


# ------------------------------ Wrappers -------------------------------------

def bert_encoder(emb, mask_bias, params):
    bt = emb.shape[0]    # stacked batch = 2B

    def wspec(*shape):   # per-layer stacked weight, indexed by layer axis
        n = len(shape)
        return pl.BlockSpec((1,) + shape, lambda b, l, n=n: (l,) + (0,) * n)

    def fspec(*shape):   # fixed (per-model) parameter
        n = len(shape)
        return pl.BlockSpec(shape, lambda b, l, n=n: (0,) * n)

    in_specs = [
        pl.BlockSpec((1, S, H), lambda b, l: (b, 0, 0)),   # embeddings
        pl.BlockSpec((1, 1, S), lambda b, l: (b, 0, 0)),   # mask bias
        fspec(1, H), fspec(1, H),                          # emb LN gamma/beta
        wspec(H, H), wspec(1, H),                          # wq, bq
        wspec(H, H), wspec(1, H),                          # wk, bk
        wspec(H, H), wspec(1, H),                          # wv, bv
        wspec(H, H), wspec(1, H),                          # wo, bo
        wspec(1, H), wspec(1, H),                          # ln1 gamma/beta
        wspec(H, INTER), wspec(1, INTER),                  # wi, bi
        wspec(INTER, H), wspec(1, H),                      # wo2, bo2
        wspec(1, H), wspec(1, H),                          # ln2 gamma/beta
    ]
    return pl.pallas_call(
        encoder_kernel,
        out_shape=jax.ShapeDtypeStruct((bt, S, H), jnp.float32),
        grid_spec=pltpu.PrefetchScalarGridSpec(
            num_scalar_prefetch=0,
            grid=(bt, NUM_LAYERS),
            in_specs=in_specs,
            out_specs=pl.BlockSpec((1, S, H), lambda b, l: (b, 0, 0)),
        ),
        compiler_params=pltpu.CompilerParams(
            dimension_semantics=("parallel", "arbitrary")),
    )(emb, mask_bias, params["emb_ln_g"], params["emb_ln_b"],
      params["wq"], params["bq"], params["wk"], params["bk"],
      params["wv"], params["bv"], params["wo"], params["bo"],
      params["ln1_g"], params["ln1_b"],
      params["wi"], params["bi"], params["wo2"], params["bo2"],
      params["ln2_g"], params["ln2_b"])


def pool_mix_classify(beta_arr, cls_all, wp, bp, wc, bc):
    vm = pl.BlockSpec(memory_space=pltpu.MemorySpace.VMEM)
    sm = pl.BlockSpec(memory_space=pltpu.MemorySpace.SMEM)
    return pl.pallas_call(
        pool_mix_classify_kernel,
        out_shape=(jax.ShapeDtypeStruct((B, H), jnp.float32),
                   jax.ShapeDtypeStruct((B, 1), jnp.float32)),
        in_specs=[sm, vm, vm, vm, vm, vm],
        out_specs=(vm, vm),
    )(beta_arr, cls_all, wp, bp, wc, bc)


# ------------------------- Model params / forward ----------------------------

def init_params(key):
    ks = jax.random.split(key, 16)

    def dense(k, shp, dtype=jnp.float32):
        return (0.02 * jax.random.normal(k, shp, jnp.float32)).astype(dtype)

    L = NUM_LAYERS
    return {
        "word_emb": dense(ks[0], (VOCAB, H)),
        "pos_emb": dense(ks[1], (S, H)),
        "type_emb": dense(ks[2], (2, H)),
        "emb_ln_g": jnp.ones((1, H), jnp.float32),
        "emb_ln_b": jnp.zeros((1, H), jnp.float32),
        # Per-layer weights stacked on a leading layer axis; MXU operands bf16.
        "wq": dense(ks[3], (L, H, H), jnp.bfloat16),
        "bq": jnp.zeros((L, 1, H), jnp.float32),
        "wk": dense(ks[4], (L, H, H), jnp.bfloat16),
        "bk": jnp.zeros((L, 1, H), jnp.float32),
        "wv": dense(ks[5], (L, H, H), jnp.bfloat16),
        "bv": jnp.zeros((L, 1, H), jnp.float32),
        "wo": dense(ks[6], (L, H, H), jnp.bfloat16),
        "bo": jnp.zeros((L, 1, H), jnp.float32),
        "ln1_g": jnp.ones((L, 1, H), jnp.float32),
        "ln1_b": jnp.zeros((L, 1, H), jnp.float32),
        "wi": dense(ks[7], (L, H, INTER), jnp.bfloat16),
        "bi": jnp.zeros((L, 1, INTER), jnp.float32),
        "wo2": dense(ks[8], (L, INTER, H), jnp.bfloat16),
        "bo2": jnp.zeros((L, 1, H), jnp.float32),
        "ln2_g": jnp.ones((L, 1, H), jnp.float32),
        "ln2_b": jnp.zeros((L, 1, H), jnp.float32),
        "pooler_w": dense(ks[9], (H, H), jnp.bfloat16),
        "pooler_b": jnp.zeros((1, H), jnp.float32),
        "cls_w": dense(ks[10], (H, 1), jnp.bfloat16),
        "cls_b": jnp.zeros((1, 1), jnp.float32),
    }


def forward(params, input_ids_1, attention_mask_1,
            input_ids_2, attention_mask_2, beta):
    # Fuse the two BERT forward passes into one batched pass (batch = 2B).
    ids = jnp.concatenate([input_ids_1, input_ids_2], axis=0)
    mask = jnp.concatenate([attention_mask_1, attention_mask_2], axis=0)
    # Embedding lookup (glue, plain JAX): word + position + token_type(=0).
    emb = (params["word_emb"][ids]
           + params["pos_emb"][None, :, :]
           + params["type_emb"][0][None, None, :]).astype(jnp.float32)
    # HF-style additive attention mask: (1 - mask) * -10000, shape (2B, 1, S).
    mask_bias = ((1.0 - mask.astype(jnp.float32)) * -10000.0)[:, None, :]
    h = bert_encoder(emb, mask_bias, params)
    cls_all = h[:, 0, :]                 # (2B, H): [CLS] states, inputs 1 then 2
    beta_arr = jnp.full((1, 1), beta, jnp.float32)
    mixed_emb, logits = pool_mix_classify(
        beta_arr, cls_all,
        params["pooler_w"], params["pooler_b"],
        params["cls_w"], params["cls_b"])
    return mixed_emb, logits


if __name__ == "__main__":
    key = jax.random.PRNGKey(0)
    kp, k1, k2 = jax.random.split(key, 3)
    params = init_params(kp)

    input_ids_1 = jax.random.randint(k1, (B, S), 0, VOCAB, dtype=jnp.int32)
    input_ids_2 = jax.random.randint(k2, (B, S), 0, VOCAB, dtype=jnp.int32)
    attention_mask_1 = jnp.ones((B, S), jnp.int32)
    attention_mask_2 = jnp.ones((B, S), jnp.int32).at[:, S - 2:].set(0)  # padding
    beta = 0.7

    mixed_emb, logits = forward(params, input_ids_1, attention_mask_1,
                                input_ids_2, attention_mask_2, beta)
    jax.block_until_ready((mixed_emb, logits))
    assert mixed_emb.shape == (B, H) and logits.shape == (B, 1)
    print("KERNEL_OK")
</pallas_src>

<mosaic_0001>
module attributes {stable_mosaic.version = 11 : i64} {
  func.func @encoder_kernel(%arg0: i32, %arg1: i32, %arg2: memref<1x8x128xf32, #tpu.memory_space<vmem>>, %arg3: memref<1x1x8xf32, #tpu.memory_space<vmem>>, %arg4: memref<1x128xf32, #tpu.memory_space<vmem>>, %arg5: memref<1x128xf32, #tpu.memory_space<vmem>>, %arg6: memref<1x128x128xbf16, #tpu.memory_space<vmem>>, %arg7: memref<1x1x128xf32, #tpu.memory_space<vmem>>, %arg8: memref<1x128x128xbf16, #tpu.memory_space<vmem>>, %arg9: memref<1x1x128xf32, #tpu.memory_space<vmem>>, %arg10: memref<1x128x128xbf16, #tpu.memory_space<vmem>>, %arg11: memref<1x1x128xf32, #tpu.memory_space<vmem>>, %arg12: memref<1x128x128xbf16, #tpu.memory_space<vmem>>, %arg13: memref<1x1x128xf32, #tpu.memory_space<vmem>>, %arg14: memref<1x1x128xf32, #tpu.memory_space<vmem>>, %arg15: memref<1x1x128xf32, #tpu.memory_space<vmem>>, %arg16: memref<1x128x256xbf16, #tpu.memory_space<vmem>>, %arg17: memref<1x1x256xf32, #tpu.memory_space<vmem>>, %arg18: memref<1x256x128xbf16, #tpu.memory_space<vmem>>, %arg19: memref<1x1x128xf32, #tpu.memory_space<vmem>>, %arg20: memref<1x1x128xf32, #tpu.memory_space<vmem>>, %arg21: memref<1x1x128xf32, #tpu.memory_space<vmem>>, %arg22: memref<1x8x128xf32, #tpu.memory_space<vmem>>) attributes {dimension_semantics = [#tpu.dimension_semantics<parallel>, #tpu.dimension_semantics<arbitrary>], iteration_bounds = array<i64: 4, 2>, scalar_prefetch = 0 : i64, scratch_operands = 0 : i64, tpu.core_type = #tpu.core_type<tc>, window_params = [{transform_indices = @transform_0, window_bounds = array<i64: 1, 8, 128>}, {transform_indices = @transform_1, window_bounds = array<i64: 1, 1, 8>}, {pipeline_mode = #tpu.pipeline_mode<synchronous>, transform_indices = @transform_2, window_bounds = array<i64: 1, 128>}, {pipeline_mode = #tpu.pipeline_mode<synchronous>, transform_indices = @transform_3, window_bounds = array<i64: 1, 128>}, {transform_indices = @transform_4, window_bounds = array<i64: 1, 128, 128>}, {transform_indices = @transform_5, window_bounds = array<i64: 1, 1, 128>}, {transform_indices = @transform_6, window_bounds = array<i64: 1, 128, 128>}, {transform_indices = @transform_7, window_bounds = array<i64: 1, 1, 128>}, {transform_indices = @transform_8, window_bounds = array<i64: 1, 128, 128>}, {transform_indices = @transform_9, window_bounds = array<i64: 1, 1, 128>}, {transform_indices = @transform_10, window_bounds = array<i64: 1, 128, 128>}, {transform_indices = @transform_11, window_bounds = array<i64: 1, 1, 128>}, {transform_indices = @transform_12, window_bounds = array<i64: 1, 1, 128>}, {transform_indices = @transform_13, window_bounds = array<i64: 1, 1, 128>}, {transform_indices = @transform_14, window_bounds = array<i64: 1, 128, 256>}, {transform_indices = @transform_15, window_bounds = array<i64: 1, 1, 256>}, {transform_indices = @transform_16, window_bounds = array<i64: 1, 256, 128>}, {transform_indices = @transform_17, window_bounds = array<i64: 1, 1, 128>}, {transform_indices = @transform_18, window_bounds = array<i64: 1, 1, 128>}, {transform_indices = @transform_19, window_bounds = array<i64: 1, 1, 128>}, {transform_indices = @transform_20, window_bounds = array<i64: 1, 8, 128>}]} {
    %c0_i32 = arith.constant 0 : i32
    %0 = arith.cmpi eq, %arg1, %c0_i32 : i32
    %1 = arith.extui %0 : i1 to i32
    %c0_i32_0 = arith.constant 0 : i32
    %2 = arith.cmpi ne, %1, %c0_i32_0 : i32
    scf.if %2 {
      %c0_96 = arith.constant 0 : index
      %c0_97 = arith.constant 0 : index
      %c0_98 = arith.constant 0 : index
      %212 = vector.load %arg2[%c0_96, %c0_97, %c0_98] : memref<1x8x128xf32, #tpu.memory_space<vmem>>, vector<1x8x128xf32>
      %213 = vector.shape_cast %212 : vector<1x8x128xf32> to vector<8x128xf32>
      %c0_99 = arith.constant 0 : index
      %c0_100 = arith.constant 0 : index
      %214 = vector.load %arg4[%c0_99, %c0_100] : memref<1x128xf32, #tpu.memory_space<vmem>>, vector<1x128xf32>
      %c0_101 = arith.constant 0 : index
      %c0_102 = arith.constant 0 : index
      %215 = vector.load %arg5[%c0_101, %c0_102] : memref<1x128xf32, #tpu.memory_space<vmem>>, vector<1x128xf32>
      %cst_103 = arith.constant dense<0.000000e+00> : vector<8xf32>
      %216 = vector.multi_reduction <add>, %213, %cst_103 [1] : vector<8x128xf32> to vector<8xf32>
      %217 = vector.shape_cast %216 : vector<8xf32> to vector<8x1xf32>
      %cst_104 = arith.constant 1.280000e+02 : f32
      %218 = vector.broadcast %cst_104 : f32 to vector<8x1xf32>
      %219 = arith.divf %217, %218 : vector<8x1xf32>
      %220 = vector.broadcast %219 : vector<8x1xf32> to vector<8x128xf32>
      %221 = arith.subf %213, %220 : vector<8x128xf32>
      %222 = arith.mulf %221, %221 : vector<8x128xf32>
      %cst_105 = arith.constant dense<0.000000e+00> : vector<8xf32>
      %223 = vector.multi_reduction <add>, %222, %cst_105 [1] : vector<8x128xf32> to vector<8xf32>
      %224 = vector.shape_cast %223 : vector<8xf32> to vector<8x1xf32>
      %cst_106 = arith.constant 1.280000e+02 : f32
      %225 = vector.broadcast %cst_106 : f32 to vector<8x1xf32>
      %226 = arith.divf %224, %225 : vector<8x1xf32>
      %cst_107 = arith.constant 9.99999996E-13 : f32
      %227 = vector.broadcast %cst_107 : f32 to vector<8x1xf32>
      %228 = arith.addf %226, %227 : vector<8x1xf32>
      %229 = math.rsqrt %228 : vector<8x1xf32>
      %230 = vector.broadcast %229 : vector<8x1xf32> to vector<8x128xf32>
      %231 = arith.mulf %221, %230 : vector<8x128xf32>
      %232 = vector.broadcast %214 : vector<1x128xf32> to vector<8x128xf32>
      %233 = arith.mulf %231, %232 : vector<8x128xf32>
      %234 = vector.broadcast %215 : vector<1x128xf32> to vector<8x128xf32>
      %235 = arith.addf %233, %234 : vector<8x128xf32>
      %c0_108 = arith.constant 0 : index
      %c0_109 = arith.constant 0 : index
      %c0_110 = arith.constant 0 : index
      %236 = vector.load %arg22[%c0_108, %c0_109, %c0_110] : memref<1x8x128xf32, #tpu.memory_space<vmem>>, vector<1x8x128xf32>
      %237 = vector.shape_cast %236 : vector<1x8x128xf32> to vector<8x128xf32>
      %238 = vector.shape_cast %235 : vector<8x128xf32> to vector<1x8x128xf32>
      tpu.vector_store %arg22[%c0_108, %c0_109, %c0_110], %238 {strides = array<i32>} : memref<1x8x128xf32, #tpu.memory_space<vmem>>, vector<1x8x128xf32>,
    } else {
    }
    %c0 = arith.constant 0 : index
    %c0_1 = arith.constant 0 : index
    %c0_2 = arith.constant 0 : index
    %3 = vector.load %arg22[%c0, %c0_1, %c0_2] : memref<1x8x128xf32, #tpu.memory_space<vmem>>, vector<1x8x128xf32>
    %4 = vector.shape_cast %3 : vector<1x8x128xf32> to vector<8x128xf32>
    %c0_3 = arith.constant 0 : index
    %c0_4 = arith.constant 0 : index
    %c0_5 = arith.constant 0 : index
    %5 = vector.load %arg3[%c0_3, %c0_4, %c0_5] : memref<1x1x8xf32, #tpu.memory_space<vmem>>, vector<1x1x8xf32>
    %6 = vector.shape_cast %5 : vector<1x1x8xf32> to vector<1x8xf32>
    %7 = arith.truncf %4 : vector<8x128xf32> to vector<8x128xbf16>
    %c0_6 = arith.constant 0 : index
    %c0_7 = arith.constant 0 : index
    %c0_8 = arith.constant 0 : index
    %8 = vector.load %arg6[%c0_6, %c0_7, %c0_8] : memref<1x128x128xbf16, #tpu.memory_space<vmem>>, vector<1x128x128xbf16>
    %9 = vector.shape_cast %8 : vector<1x128x128xbf16> to vector<128x128xbf16>
    %cst = arith.constant dense<0.000000e+00> : vector<8x128xf32>
    %10 = tpu.matmul %7, %9, %cst {dimension_numbers = #tpu.dot_dimension_numbers<[1], [0], [0], [1], [0, 0, 1, 1], [], []>} : vector<8x128xbf16>, vector<128x128xbf16>, vector<8x128xf32> -> vector<8x128xf32>
    %c0_9 = arith.constant 0 : index
    %c0_10 = arith.constant 0 : index
    %c0_11 = arith.constant 0 : index
    %11 = vector.load %arg7[%c0_9, %c0_10, %c0_11] : memref<1x1x128xf32, #tpu.memory_space<vmem>>, vector<1x1x128xf32>
    %12 = vector.shape_cast %11 : vector<1x1x128xf32> to vector<1x128xf32>
    %13 = vector.broadcast %12 : vector<1x128xf32> to vector<8x128xf32>
    %14 = arith.addf %10, %13 : vector<8x128xf32>
    %c0_12 = arith.constant 0 : index
    %c0_13 = arith.constant 0 : index
    %c0_14 = arith.constant 0 : index
    %15 = vector.load %arg8[%c0_12, %c0_13, %c0_14] : memref<1x128x128xbf16, #tpu.memory_space<vmem>>, vector<1x128x128xbf16>
    %16 = vector.shape_cast %15 : vector<1x128x128xbf16> to vector<128x128xbf16>
    %cst_15 = arith.constant dense<0.000000e+00> : vector<8x128xf32>
    %17 = tpu.matmul %7, %16, %cst_15 {dimension_numbers = #tpu.dot_dimension_numbers<[1], [0], [0], [1], [0, 0, 1, 1], [], []>} : vector<8x128xbf16>, vector<128x128xbf16>, vector<8x128xf32> -> vector<8x128xf32>
    %c0_16 = arith.constant 0 : index
    %c0_17 = arith.constant 0 : index
    %c0_18 = arith.constant 0 : index
    %18 = vector.load %arg9[%c0_16, %c0_17, %c0_18] : memref<1x1x128xf32, #tpu.memory_space<vmem>>, vector<1x1x128xf32>
    %19 = vector.shape_cast %18 : vector<1x1x128xf32> to vector<1x128xf32>
    %20 = vector.broadcast %19 : vector<1x128xf32> to vector<8x128xf32>
    %21 = arith.addf %17, %20 : vector<8x128xf32>
    %c0_19 = arith.constant 0 : index
    %c0_20 = arith.constant 0 : index
    %c0_21 = arith.constant 0 : index
    %22 = vector.load %arg10[%c0_19, %c0_20, %c0_21] : memref<1x128x128xbf16, #tpu.memory_space<vmem>>, vector<1x128x128xbf16>
    %23 = vector.shape_cast %22 : vector<1x128x128xbf16> to vector<128x128xbf16>
    %cst_22 = arith.constant dense<0.000000e+00> : vector<8x128xf32>
    %24 = tpu.matmul %7, %23, %cst_22 {dimension_numbers = #tpu.dot_dimension_numbers<[1], [0], [0], [1], [0, 0, 1, 1], [], []>} : vector<8x128xbf16>, vector<128x128xbf16>, vector<8x128xf32> -> vector<8x128xf32>
    %c0_23 = arith.constant 0 : index
    %c0_24 = arith.constant 0 : index
    %c0_25 = arith.constant 0 : index
    %25 = vector.load %arg11[%c0_23, %c0_24, %c0_25] : memref<1x1x128xf32, #tpu.memory_space<vmem>>, vector<1x1x128xf32>
    %26 = vector.shape_cast %25 : vector<1x1x128xf32> to vector<1x128xf32>
    %27 = vector.broadcast %26 : vector<1x128xf32> to vector<8x128xf32>
    %28 = arith.addf %24, %27 : vector<8x128xf32>
    %29 = vector.extract_strided_slice %14 {offsets = [0, 0], sizes = [8, 32], strides = [1, 1]} : vector<8x128xf32> to vector<8x32xf32>
    %cst_26 = arith.constant 0.176776692 : f32
    %30 = vector.broadcast %cst_26 : f32 to vector<8x32xf32>
    %31 = arith.mulf %29, %30 : vector<8x32xf32>
    %32 = arith.truncf %31 : vector<8x32xf32> to vector<8x32xbf16>
    %33 = vector.extract_strided_slice %21 {offsets = [0, 0], sizes = [8, 32], strides = [1, 1]} : vector<8x128xf32> to vector<8x32xf32>
    %34 = arith.truncf %33 : vector<8x32xf32> to vector<8x32xbf16>
    %35 = vector.extract_strided_slice %28 {offsets = [0, 0], sizes = [8, 32], strides = [1, 1]} : vector<8x128xf32> to vector<8x32xf32>
    %36 = arith.truncf %35 : vector<8x32xf32> to vector<8x32xbf16>
    %cst_27 = arith.constant dense<0.000000e+00> : vector<8x8xf32>
    %37 = tpu.matmul %32, %34, %cst_27 {dimension_numbers = #tpu.dot_dimension_numbers<[1], [1], [0], [0], [0, 0, 1, 0], [], []>} : vector<8x32xbf16>, vector<8x32xbf16>, vector<8x8xf32> -> vector<8x8xf32>
    %38 = vector.broadcast %6 : vector<1x8xf32> to vector<8x8xf32>
    %39 = arith.addf %37, %38 : vector<8x8xf32>
    %cst_28 = arith.constant dense<0xFF800000> : vector<8xf32>
    %40 = vector.multi_reduction <maximumf>, %39, %cst_28 [1] : vector<8x8xf32> to vector<8xf32>
    %41 = vector.shape_cast %40 : vector<8xf32> to vector<8x1xf32>
    %42 = vector.broadcast %41 : vector<8x1xf32> to vector<8x8xf32>
    %43 = arith.subf %39, %42 : vector<8x8xf32>
    %44 = math.exp %43 : vector<8x8xf32>
    %cst_29 = arith.constant dense<0.000000e+00> : vector<8xf32>
    %45 = vector.multi_reduction <add>, %44, %cst_29 [1] : vector<8x8xf32> to vector<8xf32>
    %46 = vector.shape_cast %45 : vector<8xf32> to vector<8x1xf32>
    %47 = tpu.reciprocal %46 {approx = true} : vector<8x1xf32> -> vector<8x1xf32>
    %48 = vector.broadcast %47 : vector<8x1xf32> to vector<8x8xf32>
    %49 = arith.mulf %44, %48 : vector<8x8xf32>
    %50 = arith.truncf %49 : vector<8x8xf32> to vector<8x8xbf16>
    %cst_30 = arith.constant dense<0.000000e+00> : vector<8x32xf32>
    %51 = tpu.matmul %50, %36, %cst_30 {dimension_numbers = #tpu.dot_dimension_numbers<[1], [0], [0], [1], [0, 0, 1, 1], [], []>} : vector<8x8xbf16>, vector<8x32xbf16>, vector<8x32xf32> -> vector<8x32xf32>
    %52 = vector.extract_strided_slice %14 {offsets = [0, 32], sizes = [8, 32], strides = [1, 1]} : vector<8x128xf32> to vector<8x32xf32>
    %cst_31 = arith.constant 0.176776692 : f32
    %53 = vector.broadcast %cst_31 : f32 to vector<8x32xf32>
    %54 = arith.mulf %52, %53 : vector<8x32xf32>
    %55 = arith.truncf %54 : vector<8x32xf32> to vector<8x32xbf16>
    %56 = vector.extract_strided_slice %21 {offsets = [0, 32], sizes = [8, 32], strides = [1, 1]} : vector<8x128xf32> to vector<8x32xf32>
    %57 = arith.truncf %56 : vector<8x32xf32> to vector<8x32xbf16>
    %58 = vector.extract_strided_slice %28 {offsets = [0, 32], sizes = [8, 32], strides = [1, 1]} : vector<8x128xf32> to vector<8x32xf32>
    %59 = arith.truncf %58 : vector<8x32xf32> to vector<8x32xbf16>
    %cst_32 = arith.constant dense<0.000000e+00> : vector<8x8xf32>
    %60 = tpu.matmul %55, %57, %cst_32 {dimension_numbers = #tpu.dot_dimension_numbers<[1], [1], [0], [0], [0, 0, 1, 0], [], []>} : vector<8x32xbf16>, vector<8x32xbf16>, vector<8x8xf32> -> vector<8x8xf32>
    %61 = vector.broadcast %6 : vector<1x8xf32> to vector<8x8xf32>
    %62 = arith.addf %60, %61 : vector<8x8xf32>
    %cst_33 = arith.constant dense<0xFF800000> : vector<8xf32>
    %63 = vector.multi_reduction <maximumf>, %62, %cst_33 [1] : vector<8x8xf32> to vector<8xf32>
    %64 = vector.shape_cast %63 : vector<8xf32> to vector<8x1xf32>
    %65 = vector.broadcast %64 : vector<8x1xf32> to vector<8x8xf32>
    %66 = arith.subf %62, %65 : vector<8x8xf32>
    %67 = math.exp %66 : vector<8x8xf32>
    %cst_34 = arith.constant dense<0.000000e+00> : vector<8xf32>
    %68 = vector.multi_reduction <add>, %67, %cst_34 [1] : vector<8x8xf32> to vector<8xf32>
    %69 = vector.shape_cast %68 : vector<8xf32> to vector<8x1xf32>
    %70 = tpu.reciprocal %69 {approx = true} : vector<8x1xf32> -> vector<8x1xf32>
    %71 = vector.broadcast %70 : vector<8x1xf32> to vector<8x8xf32>
    %72 = arith.mulf %67, %71 : vector<8x8xf32>
    %73 = arith.truncf %72 : vector<8x8xf32> to vector<8x8xbf16>
    %cst_35 = arith.constant dense<0.000000e+00> : vector<8x32xf32>
    %74 = tpu.matmul %73, %59, %cst_35 {dimension_numbers = #tpu.dot_dimension_numbers<[1], [0], [0], [1], [0, 0, 1, 1], [], []>} : vector<8x8xbf16>, vector<8x32xbf16>, vector<8x32xf32> -> vector<8x32xf32>
    %75 = vector.extract_strided_slice %14 {offsets = [0, 64], sizes = [8, 32], strides = [1, 1]} : vector<8x128xf32> to vector<8x32xf32>
    %cst_36 = arith.constant 0.176776692 : f32
    %76 = vector.broadcast %cst_36 : f32 to vector<8x32xf32>
    %77 = arith.mulf %75, %76 : vector<8x32xf32>
    %78 = arith.truncf %77 : vector<8x32xf32> to vector<8x32xbf16>
    %79 = vector.extract_strided_slice %21 {offsets = [0, 64], sizes = [8, 32], strides = [1, 1]} : vector<8x128xf32> to vector<8x32xf32>
    %80 = arith.truncf %79 : vector<8x32xf32> to vector<8x32xbf16>
    %81 = vector.extract_strided_slice %28 {offsets = [0, 64], sizes = [8, 32], strides = [1, 1]} : vector<8x128xf32> to vector<8x32xf32>
    %82 = arith.truncf %81 : vector<8x32xf32> to vector<8x32xbf16>
    %cst_37 = arith.constant dense<0.000000e+00> : vector<8x8xf32>
    %83 = tpu.matmul %78, %80, %cst_37 {dimension_numbers = #tpu.dot_dimension_numbers<[1], [1], [0], [0], [0, 0, 1, 0], [], []>} : vector<8x32xbf16>, vector<8x32xbf16>, vector<8x8xf32> -> vector<8x8xf32>
    %84 = vector.broadcast %6 : vector<1x8xf32> to vector<8x8xf32>
    %85 = arith.addf %83, %84 : vector<8x8xf32>
    %cst_38 = arith.constant dense<0xFF800000> : vector<8xf32>
    %86 = vector.multi_reduction <maximumf>, %85, %cst_38 [1] : vector<8x8xf32> to vector<8xf32>
    %87 = vector.shape_cast %86 : vector<8xf32> to vector<8x1xf32>
    %88 = vector.broadcast %87 : vector<8x1xf32> to vector<8x8xf32>
    %89 = arith.subf %85, %88 : vector<8x8xf32>
    %90 = math.exp %89 : vector<8x8xf32>
    %cst_39 = arith.constant dense<0.000000e+00> : vector<8xf32>
    %91 = vector.multi_reduction <add>, %90, %cst_39 [1] : vector<8x8xf32> to vector<8xf32>
    %92 = vector.shape_cast %91 : vector<8xf32> to vector<8x1xf32>
    %93 = tpu.reciprocal %92 {approx = true} : vector<8x1xf32> -> vector<8x1xf32>
    %94 = vector.broadcast %93 : vector<8x1xf32> to vector<8x8xf32>
    %95 = arith.mulf %90, %94 : vector<8x8xf32>
    %96 = arith.truncf %95 : vector<8x8xf32> to vector<8x8xbf16>
    %cst_40 = arith.constant dense<0.000000e+00> : vector<8x32xf32>
    %97 = tpu.matmul %96, %82, %cst_40 {dimension_numbers = #tpu.dot_dimension_numbers<[1], [0], [0], [1], [0, 0, 1, 1], [], []>} : vector<8x8xbf16>, vector<8x32xbf16>, vector<8x32xf32> -> vector<8x32xf32>
    %98 = vector.extract_strided_slice %14 {offsets = [0, 96], sizes = [8, 32], strides = [1, 1]} : vector<8x128xf32> to vector<8x32xf32>
    %cst_41 = arith.constant 0.176776692 : f32
    %99 = vector.broadcast %cst_41 : f32 to vector<8x32xf32>
    %100 = arith.mulf %98, %99 : vector<8x32xf32>
    %101 = arith.truncf %100 : vector<8x32xf32> to vector<8x32xbf16>
    %102 = vector.extract_strided_slice %21 {offsets = [0, 96], sizes = [8, 32], strides = [1, 1]} : vector<8x128xf32> to vector<8x32xf32>
    %103 = arith.truncf %102 : vector<8x32xf32> to vector<8x32xbf16>
    %104 = vector.extract_strided_slice %28 {offsets = [0, 96], sizes = [8, 32], strides = [1, 1]} : vector<8x128xf32> to vector<8x32xf32>
    %105 = arith.truncf %104 : vector<8x32xf32> to vector<8x32xbf16>
    %cst_42 = arith.constant dense<0.000000e+00> : vector<8x8xf32>
    %106 = tpu.matmul %101, %103, %cst_42 {dimension_numbers = #tpu.dot_dimension_numbers<[1], [1], [0], [0], [0, 0, 1, 0], [], []>} : vector<8x32xbf16>, vector<8x32xbf16>, vector<8x8xf32> -> vector<8x8xf32>
    %107 = vector.broadcast %6 : vector<1x8xf32> to vector<8x8xf32>
    %108 = arith.addf %106, %107 : vector<8x8xf32>
    %cst_43 = arith.constant dense<0xFF800000> : vector<8xf32>
    %109 = vector.multi_reduction <maximumf>, %108, %cst_43 [1] : vector<8x8xf32> to vector<8xf32>
    %110 = vector.shape_cast %109 : vector<8xf32> to vector<8x1xf32>
    %111 = vector.broadcast %110 : vector<8x1xf32> to vector<8x8xf32>
    %112 = arith.subf %108, %111 : vector<8x8xf32>
    %113 = math.exp %112 : vector<8x8xf32>
    %cst_44 = arith.constant dense<0.000000e+00> : vector<8xf32>
    %114 = vector.multi_reduction <add>, %113, %cst_44 [1] : vector<8x8xf32> to vector<8xf32>
    %115 = vector.shape_cast %114 : vector<8xf32> to vector<8x1xf32>
    %116 = tpu.reciprocal %115 {approx = true} : vector<8x1xf32> -> vector<8x1xf32>
    %117 = vector.broadcast %116 : vector<8x1xf32> to vector<8x8xf32>
    %118 = arith.mulf %113, %117 : vector<8x8xf32>
    %119 = arith.truncf %118 : vector<8x8xf32> to vector<8x8xbf16>
    %cst_45 = arith.constant dense<0.000000e+00> : vector<8x32xf32>
    %120 = tpu.matmul %119, %105, %cst_45 {dimension_numbers = #tpu.dot_dimension_numbers<[1], [0], [0], [1], [0, 0, 1, 1], [], []>} : vector<8x8xbf16>, vector<8x32xbf16>, vector<8x32xf32> -> vector<8x32xf32>
    %121 = tpu.concatenate %51, %74, %97, %120 in 1 : vector<8x32xf32>, vector<8x32xf32>, vector<8x32xf32>, vector<8x32xf32> -> vector<8x128xf32>
    %122 = arith.truncf %121 : vector<8x128xf32> to vector<8x128xbf16>
    %c0_46 = arith.constant 0 : index
    %c0_47 = arith.constant 0 : index
    %c0_48 = arith.constant 0 : index
    %123 = vector.load %arg12[%c0_46, %c0_47, %c0_48] : memref<1x128x128xbf16, #tpu.memory_space<vmem>>, vector<1x128x128xbf16>
    %124 = vector.shape_cast %123 : vector<1x128x128xbf16> to vector<128x128xbf16>
    %cst_49 = arith.constant dense<0.000000e+00> : vector<8x128xf32>
    %125 = tpu.matmul %122, %124, %cst_49 {dimension_numbers = #tpu.dot_dimension_numbers<[1], [0], [0], [1], [0, 0, 1, 1], [], []>} : vector<8x128xbf16>, vector<128x128xbf16>, vector<8x128xf32> -> vector<8x128xf32>
    %c0_50 = arith.constant 0 : index
    %c0_51 = arith.constant 0 : index
    %c0_52 = arith.constant 0 : index
    %126 = vector.load %arg13[%c0_50, %c0_51, %c0_52] : memref<1x1x128xf32, #tpu.memory_space<vmem>>, vector<1x1x128xf32>
    %127 = vector.shape_cast %126 : vector<1x1x128xf32> to vector<1x128xf32>
    %128 = vector.broadcast %127 : vector<1x128xf32> to vector<8x128xf32>
    %129 = arith.addf %125, %128 : vector<8x128xf32>
    %130 = arith.addf %4, %129 : vector<8x128xf32>
    %c0_53 = arith.constant 0 : index
    %c0_54 = arith.constant 0 : index
    %c0_55 = arith.constant 0 : index
    %131 = vector.load %arg14[%c0_53, %c0_54, %c0_55] : memref<1x1x128xf32, #tpu.memory_space<vmem>>, vector<1x1x128xf32>
    %132 = vector.shape_cast %131 : vector<1x1x128xf32> to vector<1x128xf32>
    %c0_56 = arith.constant 0 : index
    %c0_57 = arith.constant 0 : index
    %c0_58 = arith.constant 0 : index
    %133 = vector.load %arg15[%c0_56, %c0_57, %c0_58] : memref<1x1x128xf32, #tpu.memory_space<vmem>>, vector<1x1x128xf32>
    %134 = vector.shape_cast %133 : vector<1x1x128xf32> to vector<1x128xf32>
    %cst_59 = arith.constant dense<0.000000e+00> : vector<8xf32>
    %135 = vector.multi_reduction <add>, %130, %cst_59 [1] : vector<8x128xf32> to vector<8xf32>
    %136 = vector.shape_cast %135 : vector<8xf32> to vector<8x1xf32>
    %cst_60 = arith.constant 1.280000e+02 : f32
    %137 = vector.broadcast %cst_60 : f32 to vector<8x1xf32>
    %138 = arith.divf %136, %137 : vector<8x1xf32>
    %139 = vector.broadcast %138 : vector<8x1xf32> to vector<8x128xf32>
    %140 = arith.subf %130, %139 : vector<8x128xf32>
    %141 = arith.mulf %140, %140 : vector<8x128xf32>
    %cst_61 = arith.constant dense<0.000000e+00> : vector<8xf32>
    %142 = vector.multi_reduction <add>, %141, %cst_61 [1] : vector<8x128xf32> to vector<8xf32>
    %143 = vector.shape_cast %142 : vector<8xf32> to vector<8x1xf32>
    %cst_62 = arith.constant 1.280000e+02 : f32
    %144 = vector.broadcast %cst_62 : f32 to vector<8x1xf32>
    %145 = arith.divf %143, %144 : vector<8x1xf32>
    %cst_63 = arith.constant 9.99999996E-13 : f32
    %146 = vector.broadcast %cst_63 : f32 to vector<8x1xf32>
    %147 = arith.addf %145, %146 : vector<8x1xf32>
    %148 = math.rsqrt %147 : vector<8x1xf32>
    %149 = vector.broadcast %148 : vector<8x1xf32> to vector<8x128xf32>
    %150 = arith.mulf %140, %149 : vector<8x128xf32>
    %151 = vector.broadcast %132 : vector<1x128xf32> to vector<8x128xf32>
    %152 = arith.mulf %150, %151 : vector<8x128xf32>
    %153 = vector.broadcast %134 : vector<1x128xf32> to vector<8x128xf32>
    %154 = arith.addf %152, %153 : vector<8x128xf32>
    %155 = arith.truncf %154 : vector<8x128xf32> to vector<8x128xbf16>
    %c0_64 = arith.constant 0 : index
    %c0_65 = arith.constant 0 : index
    %c0_66 = arith.constant 0 : index
    %156 = vector.load %arg16[%c0_64, %c0_65, %c0_66] : memref<1x128x256xbf16, #tpu.memory_space<vmem>>, vector<1x128x256xbf16>
    %157 = vector.shape_cast %156 : vector<1x128x256xbf16> to vector<128x256xbf16>
    %cst_67 = arith.constant dense<0.000000e+00> : vector<8x256xf32>
    %158 = tpu.matmul %155, %157, %cst_67 {dimension_numbers = #tpu.dot_dimension_numbers<[1], [0], [0], [1], [0, 0, 1, 1], [], []>} : vector<8x128xbf16>, vector<128x256xbf16>, vector<8x256xf32> -> vector<8x256xf32>
    %c0_68 = arith.constant 0 : index
    %c0_69 = arith.constant 0 : index
    %c0_70 = arith.constant 0 : index
    %159 = vector.load %arg17[%c0_68, %c0_69, %c0_70] : memref<1x1x256xf32, #tpu.memory_space<vmem>>, vector<1x1x256xf32>
    %160 = vector.shape_cast %159 : vector<1x1x256xf32> to vector<1x256xf32>
    %161 = vector.broadcast %160 : vector<1x256xf32> to vector<8x256xf32>
    %162 = arith.addf %158, %161 : vector<8x256xf32>
    %163 = arith.mulf %162, %162 : vector<8x256xf32>
    %164 = arith.mulf %162, %163 : vector<8x256xf32>
    %cst_71 = arith.constant 4.471500e-02 : f32
    %165 = vector.broadcast %cst_71 : f32 to vector<8x256xf32>
    %166 = arith.mulf %165, %164 : vector<8x256xf32>
    %167 = arith.addf %162, %166 : vector<8x256xf32>
    %cst_72 = arith.constant 0.797884583 : f32
    %168 = vector.broadcast %cst_72 : f32 to vector<8x256xf32>
    %169 = arith.mulf %168, %167 : vector<8x256xf32>
    %170 = math.tanh %169 : vector<8x256xf32>
    %cst_73 = arith.constant 1.000000e+00 : f32
    %171 = vector.broadcast %cst_73 : f32 to vector<8x256xf32>
    %172 = arith.addf %171, %170 : vector<8x256xf32>
    %cst_74 = arith.constant 5.000000e-01 : f32
    %173 = vector.broadcast %cst_74 : f32 to vector<8x256xf32>
    %174 = arith.mulf %173, %172 : vector<8x256xf32>
    %175 = arith.mulf %162, %174 : vector<8x256xf32>
    %176 = arith.truncf %175 : vector<8x256xf32> to vector<8x256xbf16>
    %c0_75 = arith.constant 0 : index
    %c0_76 = arith.constant 0 : index
    %c0_77 = arith.constant 0 : index
    %177 = vector.load %arg18[%c0_75, %c0_76, %c0_77] : memref<1x256x128xbf16, #tpu.memory_space<vmem>>, vector<1x256x128xbf16>
    %178 = vector.shape_cast %177 : vector<1x256x128xbf16> to vector<256x128xbf16>
    %cst_78 = arith.constant dense<0.000000e+00> : vector<8x128xf32>
    %179 = tpu.matmul %176, %178, %cst_78 {dimension_numbers = #tpu.dot_dimension_numbers<[1], [0], [0], [1], [0, 0, 1, 1], [], []>} : vector<8x256xbf16>, vector<256x128xbf16>, vector<8x128xf32> -> vector<8x128xf32>
    %c0_79 = arith.constant 0 : index
    %c0_80 = arith.constant 0 : index
    %c0_81 = arith.constant 0 : index
    %180 = vector.load %arg19[%c0_79, %c0_80, %c0_81] : memref<1x1x128xf32, #tpu.memory_space<vmem>>, vector<1x1x128xf32>
    %181 = vector.shape_cast %180 : vector<1x1x128xf32> to vector<1x128xf32>
    %182 = vector.broadcast %181 : vector<1x128xf32> to vector<8x128xf32>
    %183 = arith.addf %179, %182 : vector<8x128xf32>
    %184 = arith.addf %154, %183 : vector<8x128xf32>
    %c0_82 = arith.constant 0 : index
    %c0_83 = arith.constant 0 : index
    %c0_84 = arith.constant 0 : index
    %185 = vector.load %arg20[%c0_82, %c0_83, %c0_84] : memref<1x1x128xf32, #tpu.memory_space<vmem>>, vector<1x1x128xf32>
    %186 = vector.shape_cast %185 : vector<1x1x128xf32> to vector<1x128xf32>
    %c0_85 = arith.constant 0 : index
    %c0_86 = arith.constant 0 : index
    %c0_87 = arith.constant 0 : index
    %187 = vector.load %arg21[%c0_85, %c0_86, %c0_87] : memref<1x1x128xf32, #tpu.memory_space<vmem>>, vector<1x1x128xf32>
    %188 = vector.shape_cast %187 : vector<1x1x128xf32> to vector<1x128xf32>
    %cst_88 = arith.constant dense<0.000000e+00> : vector<8xf32>
    %189 = vector.multi_reduction <add>, %184, %cst_88 [1] : vector<8x128xf32> to vector<8xf32>
    %190 = vector.shape_cast %189 : vector<8xf32> to vector<8x1xf32>
    %cst_89 = arith.constant 1.280000e+02 : f32
    %191 = vector.broadcast %cst_89 : f32 to vector<8x1xf32>
    %192 = arith.divf %190, %191 : vector<8x1xf32>
    %193 = vector.broadcast %192 : vector<8x1xf32> to vector<8x128xf32>
    %194 = arith.subf %184, %193 : vector<8x128xf32>
    %195 = arith.mulf %194, %194 : vector<8x128xf32>
    %cst_90 = arith.constant dense<0.000000e+00> : vector<8xf32>
    %196 = vector.multi_reduction <add>, %195, %cst_90 [1] : vector<8x128xf32> to vector<8xf32>
    %197 = vector.shape_cast %196 : vector<8xf32> to vector<8x1xf32>
    %cst_91 = arith.constant 1.280000e+02 : f32
    %198 = vector.broadcast %cst_91 : f32 to vector<8x1xf32>
    %199 = arith.divf %197, %198 : vector<8x1xf32>
    %cst_92 = arith.constant 9.99999996E-13 : f32
    %200 = vector.broadcast %cst_92 : f32 to vector<8x1xf32>
    %201 = arith.addf %199, %200 : vector<8x1xf32>
    %202 = math.rsqrt %201 : vector<8x1xf32>
    %203 = vector.broadcast %202 : vector<8x1xf32> to vector<8x128xf32>
    %204 = arith.mulf %194, %203 : vector<8x128xf32>
    %205 = vector.broadcast %186 : vector<1x128xf32> to vector<8x128xf32>
    %206 = arith.mulf %204, %205 : vector<8x128xf32>
    %207 = vector.broadcast %188 : vector<1x128xf32> to vector<8x128xf32>
    %208 = arith.addf %206, %207 : vector<8x128xf32>
    %c0_93 = arith.constant 0 : index
    %c0_94 = arith.constant 0 : index
    %c0_95 = arith.constant 0 : index
    %209 = vector.load %arg22[%c0_93, %c0_94, %c0_95] : memref<1x8x128xf32, #tpu.memory_space<vmem>>, vector<1x8x128xf32>
    %210 = vector.shape_cast %209 : vector<1x8x128xf32> to vector<8x128xf32>
    %211 = vector.shape_cast %208 : vector<8x128xf32> to vector<1x8x128xf32>
    tpu.vector_store %arg22[%c0_93, %c0_94, %c0_95], %211 {strides = array<i32>} : memref<1x8x128xf32, #tpu.memory_space<vmem>>, vector<1x8x128xf32>,
    return
  }
  func.func @transform_0(%arg0: i32, %arg1: i32) -> (i32, i32, i32) {
    %c0_i32 = arith.constant 0 : i32
    %c0_i32_0 = arith.constant 0 : i32
    %c0_i32_1 = arith.constant 0 : i32
    return %arg0, %c0_i32, %c0_i32_0 : i32, i32, i32
  }
  func.func @transform_1(%arg0: i32, %arg1: i32) -> (i32, i32, i32) {
    %c0_i32 = arith.constant 0 : i32
    %c0_i32_0 = arith.constant 0 : i32
    %c0_i32_1 = arith.constant 0 : i32
    return %arg0, %c0_i32, %c0_i32_0 : i32, i32, i32
  }
  func.func @transform_2(%arg0: i32, %arg1: i32) -> (i32, i32) {
    %c0_i32 = arith.constant 0 : i32
    %c0_i32_0 = arith.constant 0 : i32
    %c0_i32_1 = arith.constant 0 : i32
    return %c0_i32, %c0_i32_0 : i32, i32
  }
  func.func @transform_3(%arg0: i32, %arg1: i32) -> (i32, i32) {
    %c0_i32 = arith.constant 0 : i32
    %c0_i32_0 = arith.constant 0 : i32
    %c0_i32_1 = arith.constant 0 : i32
    return %c0_i32, %c0_i32_0 : i32, i32
  }
  func.func @transform_4(%arg0: i32, %arg1: i32) -> (i32, i32, i32) {
    %c0_i32 = arith.constant 0 : i32
    %c0_i32_0 = arith.constant 0 : i32
    %c0_i32_1 = arith.constant 0 : i32
    return %arg1, %c0_i32, %c0_i32_0 : i32, i32, i32
  }
  func.func @transform_5(%arg0: i32, %arg1: i32) -> (i32, i32, i32) {
    %c0_i32 = arith.constant 0 : i32
    %c0_i32_0 = arith.constant 0 : i32
    %c0_i32_1 = arith.constant 0 : i32
    return %arg1, %c0_i32, %c0_i32_0 : i32, i32, i32
  }
  func.func @transform_6(%arg0: i32, %arg1: i32) -> (i32, i32, i32) {
    %c0_i32 = arith.constant 0 : i32
    %c0_i32_0 = arith.constant 0 : i32
    %c0_i32_1 = arith.constant 0 : i32
    return %arg1, %c0_i32, %c0_i32_0 : i32, i32, i32
  }
  func.func @transform_7(%arg0: i32, %arg1: i32) -> (i32, i32, i32) {
    %c0_i32 = arith.constant 0 : i32
    %c0_i32_0 = arith.constant 0 : i32
    %c0_i32_1 = arith.constant 0 : i32
    return %arg1, %c0_i32, %c0_i32_0 : i32, i32, i32
  }
  func.func @transform_8(%arg0: i32, %arg1: i32) -> (i32, i32, i32) {
    %c0_i32 = arith.constant 0 : i32
    %c0_i32_0 = arith.constant 0 : i32
    %c0_i32_1 = arith.constant 0 : i32
    return %arg1, %c0_i32, %c0_i32_0 : i32, i32, i32
  }
  func.func @transform_9(%arg0: i32, %arg1: i32) -> (i32, i32, i32) {
    %c0_i32 = arith.constant 0 : i32
    %c0_i32_0 = arith.constant 0 : i32
    %c0_i32_1 = arith.constant 0 : i32
    return %arg1, %c0_i32, %c0_i32_0 : i32, i32, i32
  }
  func.func @transform_10(%arg0: i32, %arg1: i32) -> (i32, i32, i32) {
    %c0_i32 = arith.constant 0 : i32
    %c0_i32_0 = arith.constant 0 : i32
    %c0_i32_1 = arith.constant 0 : i32
    return %arg1, %c0_i32, %c0_i32_0 : i32, i32, i32
  }
  func.func @transform_11(%arg0: i32, %arg1: i32) -> (i32, i32, i32) {
    %c0_i32 = arith.constant 0 : i32
    %c0_i32_0 = arith.constant 0 : i32
    %c0_i32_1 = arith.constant 0 : i32
    return %arg1, %c0_i32, %c0_i32_0 : i32, i32, i32
  }
  func.func @transform_12(%arg0: i32, %arg1: i32) -> (i32, i32, i32) {
    %c0_i32 = arith.constant 0 : i32
    %c0_i32_0 = arith.constant 0 : i32
    %c0_i32_1 = arith.constant 0 : i32
    return %arg1, %c0_i32, %c0_i32_0 : i32, i32, i32
  }
  func.func @transform_13(%arg0: i32, %arg1: i32) -> (i32, i32, i32) {
    %c0_i32 = arith.constant 0 : i32
    %c0_i32_0 = arith.constant 0 : i32
    %c0_i32_1 = arith.constant 0 : i32
    return %arg1, %c0_i32, %c0_i32_0 : i32, i32, i32
  }
  func.func @transform_14(%arg0: i32, %arg1: i32) -> (i32, i32, i32) {
    %c0_i32 = arith.constant 0 : i32
    %c0_i32_0 = arith.constant 0 : i32
    %c0_i32_1 = arith.constant 0 : i32
    return %arg1, %c0_i32, %c0_i32_0 : i32, i32, i32
  }
  func.func @transform_15(%arg0: i32, %arg1: i32) -> (i32, i32, i32) {
    %c0_i32 = arith.constant 0 : i32
    %c0_i32_0 = arith.constant 0 : i32
    %c0_i32_1 = arith.constant 0 : i32
    return %arg1, %c0_i32, %c0_i32_0 : i32, i32, i32
  }
  func.func @transform_16(%arg0: i32, %arg1: i32) -> (i32, i32, i32) {
    %c0_i32 = arith.constant 0 : i32
    %c0_i32_0 = arith.constant 0 : i32
    %c0_i32_1 = arith.constant 0 : i32
    return %arg1, %c0_i32, %c0_i32_0 : i32, i32, i32
  }
  func.func @transform_17(%arg0: i32, %arg1: i32) -> (i32, i32, i32) {
    %c0_i32 = arith.constant 0 : i32
    %c0_i32_0 = arith.constant 0 : i32
    %c0_i32_1 = arith.constant 0 : i32
    return %arg1, %c0_i32, %c0_i32_0 : i32, i32, i32
  }
  func.func @transform_18(%arg0: i32, %arg1: i32) -> (i32, i32, i32) {
    %c0_i32 = arith.constant 0 : i32
    %c0_i32_0 = arith.constant 0 : i32
    %c0_i32_1 = arith.constant 0 : i32
    return %arg1, %c0_i32, %c0_i32_0 : i32, i32, i32
  }
  func.func @transform_19(%arg0: i32, %arg1: i32) -> (i32, i32, i32) {
    %c0_i32 = arith.constant 0 : i32
    %c0_i32_0 = arith.constant 0 : i32
    %c0_i32_1 = arith.constant 0 : i32
    return %arg1, %c0_i32, %c0_i32_0 : i32, i32, i32
  }
  func.func @transform_20(%arg0: i32, %arg1: i32) -> (i32, i32, i32) {
    %c0_i32 = arith.constant 0 : i32
    %c0_i32_0 = arith.constant 0 : i32
    %c0_i32_1 = arith.constant 0 : i32
    return %arg0, %c0_i32, %c0_i32_0 : i32, i32, i32
  }
}

</mosaic_0001>

<llo_original>
// kernel: tpu_custom_call.1
$region0: #{tpu_custom_call.1}
  #allocation0 [shape = 'u32[]', space=smem, size = 0x4, offset = 0x4, fixed_abs, tag = 'smem constant byte address 0x4 - core index']
  #allocation1 [shape = 'u32[72,128]{1,0:T(1,128)}', space=vmem, size = 0x9000, scoped, tag = 'internal scratch']
  %s0 = inlined_call_operand.hbm [shape: f32[4,8,128], index: 0, kind: input, shape index: {}]
  %s1 = inlined_call_operand.hbm [shape: f32[4,1,8], index: 1, kind: input, shape index: {}]
  %s2 = inlined_call_operand.hbm [shape: f32[1,128], index: 2, kind: input, shape index: {}]
  %s3 = inlined_call_operand.hbm [shape: f32[1,128], index: 3, kind: input, shape index: {}]
  %s4 = inlined_call_operand.hbm [shape: bf16[2,128,128], index: 4, kind: input, shape index: {}]
  %s5 = inlined_call_operand.vmem [shape: f32[2,1,128], index: 5, kind: input, shape index: {}]
  %s6 = inlined_call_operand.hbm [shape: bf16[2,128,128], index: 6, kind: input, shape index: {}]
  %s7 = inlined_call_operand.hbm [shape: f32[2,1,128], index: 7, kind: input, shape index: {}]
  %s8 = inlined_call_operand.hbm [shape: bf16[2,128,128], index: 8, kind: input, shape index: {}]
  %s9 = inlined_call_operand.vmem [shape: f32[2,1,128], index: 9, kind: input, shape index: {}]
  %s10 = inlined_call_operand.hbm [shape: bf16[2,128,128], index: 10, kind: input, shape index: {}]
  %s11 = inlined_call_operand.vmem [shape: f32[2,1,128], index: 11, kind: input, shape index: {}]
  %s12 = inlined_call_operand.hbm [shape: f32[2,1,128], index: 12, kind: input, shape index: {}]
  %s13 = inlined_call_operand.vmem [shape: f32[2,1,128], index: 13, kind: input, shape index: {}]
  %s14 = inlined_call_operand.hbm [shape: bf16[2,128,256], index: 14, kind: input, shape index: {}]
  %s15 = inlined_call_operand.vmem [shape: f32[2,1,256], index: 15, kind: input, shape index: {}]
  %s16 = inlined_call_operand.hbm [shape: bf16[2,256,128], index: 16, kind: input, shape index: {}]
  %s17 = inlined_call_operand.vmem [shape: f32[2,1,128], index: 17, kind: input, shape index: {}]
  %s18 = inlined_call_operand.vmem [shape: f32[2,1,128], index: 18, kind: input, shape index: {}]
  %s19 = inlined_call_operand.vmem [shape: f32[2,1,128], index: 19, kind: input, shape index: {}]
  %s20 = inlined_call_operand.hbm [shape: f32[4,8,128], index: 20, kind: output, shape index: {}]
  %s21 = sld [smem:[#allocation0]]
  $region165: #{tpu_custom_call.1} parent=0
    _
  %s23 = ssub.s32 1, %s21
  %s24 = scalar_select 0, %s23, %s21
  $region1: #{tpu_custom_call.1} parent=0
    #allocation2 [shape = 'u8[8192]{0}', space=vmem, size = 0x2000, scoped, tag = 'input window, operand 0']
    #allocation3 [shape = 's32[2]{0}', space=sflag, size = 0x8, scoped, tag = 'scoped memory for tpu_custom_call.1']
    #allocation4 [shape = 's32[2]{0}', space=sflag, size = 0x8, scoped, tag = 'scoped memory for tpu_custom_call.1']
    #allocation5 [shape = 'u8[1024]{0}', space=vmem, size = 0x400, scoped, tag = 'input window, operand 1']
    #allocation6 [shape = 's32[2]{0}', space=sflag, size = 0x8, scoped, tag = 'scoped memory for tpu_custom_call.1']
    #allocation7 [shape = 'u8[512]{0}', space=vmem, size = 0x400, scoped, tag = 'input window, operand 2, single buffered']
    #allocation8 [shape = 'u8[512]{0}', space=vmem, size = 0x400, scoped, tag = 'input window, operand 3, single buffered']
    #allocation9 [shape = 's32[1]{0}', space=sflag, size = 0x4, scoped, tag = 'scoped memory for tpu_custom_call.1']
    #allocation10 [shape = 'u8[65536]{0}', space=vmem, size = 0x10000, scoped, tag = 'input window, operand 4']
    #allocation11 [shape = 'u8[65536]{0}', space=vmem, size = 0x10000, scoped, tag = 'input window, operand 6']
    #allocation12 [shape = 'u8[1024]{0}', space=vmem, size = 0x400, scoped, tag = 'input window, operand 7']
    #allocation13 [shape = 'u8[65536]{0}', space=vmem, size = 0x10000, scoped, tag = 'input window, operand 8']
    #allocation14 [shape = 'u8[65536]{0}', space=vmem, size = 0x10000, scoped, tag = 'input window, operand 10']
    #allocation15 [shape = 'u8[1024]{0}', space=vmem, size = 0x400, scoped, tag = 'input window, operand 12']
    #allocation16 [shape = 'u8[131072]{0}', space=vmem, size = 0x20000, scoped, tag = 'input window, operand 14']
    #allocation17 [shape = 'u8[131072]{0}', space=vmem, size = 0x20000, scoped, tag = 'input window, operand 16']
    #allocation18 [shape = 'u8[8192]{0}', space=vmem, size = 0x2000, scoped, tag = 'output window, operand 0']
    %25 = vsyncpa [#allocation3], 0
    %s26 = scalar_lea.sflag [#allocation3], 1
    %27 = vsyncpa %s26, 0
    %28 = vsyncpa [#allocation6], 0
    %s29 = scalar_lea.sflag [#allocation6], 1
    %30 = vsyncpa %s29, 0
    %31 = vsyncpa [#allocation9], 0
    %32 = vsyncpa [#allocation4], 0
    %s33 = scalar_lea.sflag [#allocation4], 1
    %34 = vsyncpa %s33, 0
    loop: start=0, step=1, limit=10
    $region2: #{tpu_custom_call.1} parent=1 // loop_pre_header
      _
    $region3: #{tpu_custom_call.1} parent=1 // loop_header
      %s36 = sphi 0, %s40
      %p37 = scmp.ge.s32.totalorder %s36, 10
      %s43 = sphi 0, %s55
      %s44 = sphi 0, %s51
      %s45 = sphi 0, %s43
      %s46 = sphi 0, %s44
      %s47 = sphi 0, %s45
      %s48 = sphi 0, %s46
      %s58 = sphi 0, %s60
      %s61 = sphi 0, %s58
      %s62 = sphi 0, %s61
      %s78 = sphi 0, %s62
      %s84 = sphi 0, %s86
      %s87 = sphi 0, %s84
      %s88 = sphi 0, %s87
      %s104 = sphi 0, %s88
      %s108 = sphi 0, %s108
      %s110 = sphi 0, %s108
      %s111 = sphi 0, %s110
      %s125 = sphi 0, %s111
      %s129 = sphi 0, %s129
      %s131 = sphi 0, %s129
      %s132 = sphi 0, %s131
      %s146 = sphi 0, %s132
      %s152 = sphi 0, %s154
      %s155 = sphi 0, %s152
      %s156 = sphi 0, %s155
      %s172 = sphi 0, %s156
      %s178 = sphi 0, %s180
      %s181 = sphi 0, %s178
      %s182 = sphi 0, %s181
      %s198 = sphi 0, %s182
      %s204 = sphi 0, %s206
      %s207 = sphi 0, %s204
      %s208 = sphi 0, %s207
      %s224 = sphi 0, %s208
      %s230 = sphi 0, %s232
      %s233 = sphi 0, %s230
      %s234 = sphi 0, %s233
      %s250 = sphi 0, %s234
      %s256 = sphi 0, %s258
      %s259 = sphi 0, %s256
      %s260 = sphi 0, %s259
      %s276 = sphi 0, %s260
      %s282 = sphi 0, %s284
      %s285 = sphi 0, %s282
      %s286 = sphi 0, %s285
      %s302 = sphi 0, %s286
      %s308 = sphi 0, %s310
      %s311 = sphi 0, %s308
      %s312 = sphi 0, %s311
      %s328 = sphi 0, %s312
      %s334 = sphi 0, %s336
      %s337 = sphi 0, %s334
      %s338 = sphi 0, %s337
      %s354 = sphi 0, %s338
      %s360 = sphi 0, %s362
      %s363 = sphi 0, %s360
      %s364 = sphi 0, %s363
      %s380 = sphi 0, %s364
      %s386 = sphi 0, %s388
      %s389 = sphi 0, %s386
      %s390 = sphi 0, %s389
      %s406 = sphi 0, %s390
      %s412 = sphi 0, %s414
      %s415 = sphi 0, %s412
      %s416 = sphi 0, %s415
      %s432 = sphi 0, %s416
      %s438 = sphi 0, %s440
      %s441 = sphi 0, %s438
      %s442 = sphi 0, %s441
      %s458 = sphi 0, %s442
      %s464 = sphi 0, %s466
      %s467 = sphi 0, %s464
      %s468 = sphi 0, %s467
      %s484 = sphi 0, %s468
      %s490 = sphi 0, %s492
      %s493 = sphi 0, %s490
      %s494 = sphi 0, %s493
      %s510 = sphi 0, %s494
      %s516 = sphi 0, %s518
      %s519 = sphi 0, %s516
      %s520 = sphi 0, %s519
      %s536 = sphi 0, %s520
      %s542 = sphi 0, %s544
      %s545 = sphi 0, %s542
      %s546 = sphi 0, %s545
      %s562 = sphi 0, %s546
      %s568 = sphi 0, %s570
      %s571 = sphi 0, %s568
      %s572 = sphi 0, %s571
      %s588 = sphi 0, %s572
    $region4: #{tpu_custom_call.1} parent=1 // loop_header_branch
      %39 = sbr.rel (%p37) target = $region8
    $region5: #{tpu_custom_call.1} parent=1 // loop_body
      %s41 = ssub.s32 %s36, 1
      %s42 = ssub.s32 %s36, 2
      %s49 = sadd.s32 1, %s44
      %p50 = scmp.ge.s32.totalorder %s49, 2
      %s51 = scalar_select %p50, 0, %s49
      %s52 = sadd.s32 1, %s43
      %s53 = scalar_select %p50, %s52, %s43
      %p54 = scmp.ge.s32.totalorder %s53, 4
      %s55 = scalar_select %p54, 0, %s53
      %s56 = ssub.s32 %s43, %s55
      %p57 = scmp.eq.s32.totalorder %s56, 0
      %s59 = sadd.s32 %s58, 1
      %s60 = scalar_select %p57, %s58, %s59
      %p63 = pneg %p57
      %p64 = scmp.eq.s32.totalorder %s36, 7
      %p65 = por %p63, %p64
      %p66 = scmp.ne.s32.totalorder %s58, %s61
      %p67 = scmp.eq.s32.totalorder %s36, 0
      %p68 = por %p66, %p67
      %p69 = scmp.ne.s32.totalorder %s58, %s61
      %p70 = scmp.eq.s32.totalorder %s41, 7
      %p71 = por %p69, %p70
      %p72 = scmp.ne.s32.totalorder %s61, %s62
      %p73 = scmp.eq.s32.totalorder %s41, 0
      %p74 = por %p72, %p73
      %p75 = scmp.ne.s32.totalorder %s61, %s62
      %p76 = scmp.eq.s32.totalorder %s42, 7
      %p77 = por %p75, %p76
      %p79 = scmp.ne.s32.totalorder %s62, %s78
      %p80 = scmp.eq.s32.totalorder %s42, 0
      %p81 = por %p79, %p80
      %s82 = ssub.s32 %s43, %s55
      %p83 = scmp.eq.s32.totalorder %s82, 0
      %s85 = sadd.s32 %s84, 1
      %s86 = scalar_select %p83, %s84, %s85
      %p89 = pneg %p83
      %p90 = scmp.eq.s32.totalorder %s36, 7
      %p91 = por %p89, %p90
      %p92 = scmp.ne.s32.totalorder %s84, %s87
      %p93 = scmp.eq.s32.totalorder %s36, 0
      %p94 = por %p92, %p93
      %p95 = scmp.ne.s32.totalorder %s84, %s87
      %p96 = scmp.eq.s32.totalorder %s41, 7
      %p97 = por %p95, %p96
      %p98 = scmp.ne.s32.totalorder %s87, %s88
      %p99 = scmp.eq.s32.totalorder %s41, 0
      %p100 = por %p98, %p99
      %p101 = scmp.ne.s32.totalorder %s87, %s88
      %p102 = scmp.eq.s32.totalorder %s42, 7
      %p103 = por %p101, %p102
      %p105 = scmp.ne.s32.totalorder %s88, %s104
      %p106 = scmp.eq.s32.totalorder %s42, 0
      %p107 = por %p105, %p106
      %s109 = sadd.s32 %s108, 1
      %p112 = scmp.eq.s32.totalorder %s36, 7
      %p113 = scmp.ne.s32.totalorder %s108, %s110
      %p114 = scmp.eq.s32.totalorder %s36, 0
      %p115 = por %p113, %p114
      %p116 = scmp.ne.s32.totalorder %s108, %s110
      %p117 = scmp.eq.s32.totalorder %s41, 7
      %p118 = por %p116, %p117
      %p119 = scmp.ne.s32.totalorder %s110, %s111
      %p120 = scmp.eq.s32.totalorder %s41, 0
      %p121 = por %p119, %p120
      %p122 = scmp.ne.s32.totalorder %s110, %s111
      %p123 = scmp.eq.s32.totalorder %s42, 7
      %p124 = por %p122, %p123
      %p126 = scmp.ne.s32.totalorder %s111, %s125
      %p127 = scmp.eq.s32.totalorder %s42, 0
      %p128 = por %p126, %p127
      %s130 = sadd.s32 %s129, 1
      %p133 = scmp.eq.s32.totalorder %s36, 7
      %p134 = scmp.ne.s32.totalorder %s129, %s131
      %p135 = scmp.eq.s32.totalorder %s36, 0
      %p136 = por %p134, %p135
      %p137 = scmp.ne.s32.totalorder %s129, %s131
      %p138 = scmp.eq.s32.totalorder %s41, 7
      %p139 = por %p137, %p138
      %p140 = scmp.ne.s32.totalorder %s131, %s132
      %p141 = scmp.eq.s32.totalorder %s41, 0
      %p142 = por %p140, %p141
      %p143 = scmp.ne.s32.totalorder %s131, %s132
      %p144 = scmp.eq.s32.totalorder %s42, 7
      %p145 = por %p143, %p144
      %p147 = scmp.ne.s32.totalorder %s132, %s146
      %p148 = scmp.eq.s32.totalorder %s42, 0
      %p149 = por %p147, %p148
      %s150 = ssub.s32 %s44, %s51
      %p151 = scmp.eq.s32.totalorder %s150, 0
      %s153 = sadd.s32 %s152, 1
      %s154 = scalar_select %p151, %s152, %s153
      %p157 = pneg %p151
      %p158 = scmp.eq.s32.totalorder %s36, 7
      %p159 = por %p157, %p158
      %p160 = scmp.ne.s32.totalorder %s152, %s155
      %p161 = scmp.eq.s32.totalorder %s36, 0
      %p162 = por %p160, %p161
      %p163 = scmp.ne.s32.totalorder %s152, %s155
      %p164 = scmp.eq.s32.totalorder %s41, 7
      %p165 = por %p163, %p164
      %p166 = scmp.ne.s32.totalorder %s155, %s156
      %p167 = scmp.eq.s32.totalorder %s41, 0
      %p168 = por %p166, %p167
      %p169 = scmp.ne.s32.totalorder %s155, %s156
      %p170 = scmp.eq.s32.totalorder %s42, 7
      %p171 = por %p169, %p170
      %p173 = scmp.ne.s32.totalorder %s156, %s172
      %p174 = scmp.eq.s32.totalorder %s42, 0
      %p175 = por %p173, %p174
      %s176 = ssub.s32 %s44, %s51
      %p177 = scmp.eq.s32.totalorder %s176, 0
      %s179 = sadd.s32 %s178, 1
      %s180 = scalar_select %p177, %s178, %s179
      %p183 = pneg %p177
      %p184 = scmp.eq.s32.totalorder %s36, 7
      %p185 = por %p183, %p184
      %p186 = scmp.ne.s32.totalorder %s178, %s181
      %p187 = scmp.eq.s32.totalorder %s36, 0
      %p188 = por %p186, %p187
      %p189 = scmp.ne.s32.totalorder %s178, %s181
      %p190 = scmp.eq.s32.totalorder %s41, 7
      %p191 = por %p189, %p190
      %p192 = scmp.ne.s32.totalorder %s181, %s182
      %p193 = scmp.eq.s32.totalorder %s41, 0
      %p194 = por %p192, %p193
      %p195 = scmp.ne.s32.totalorder %s181, %s182
      %p196 = scmp.eq.s32.totalorder %s42, 7
      %p197 = por %p195, %p196
      %p199 = scmp.ne.s32.totalorder %s182, %s198
      %p200 = scmp.eq.s32.totalorder %s42, 0
      %p201 = por %p199, %p200
      %s202 = ssub.s32 %s44, %s51
      %p203 = scmp.eq.s32.totalorder %s202, 0
      %s205 = sadd.s32 %s204, 1
      %s206 = scalar_select %p203, %s204, %s205
      %p209 = pneg %p203
      %p210 = scmp.eq.s32.totalorder %s36, 7
      %p211 = por %p209, %p210
      %p212 = scmp.ne.s32.totalorder %s204, %s207
      %p213 = scmp.eq.s32.totalorder %s36, 0
      %p214 = por %p212, %p213
      %p215 = scmp.ne.s32.totalorder %s204, %s207
      %p216 = scmp.eq.s32.totalorder %s41, 7
      %p217 = por %p215, %p216
      %p218 = scmp.ne.s32.totalorder %s207, %s208
      %p219 = scmp.eq.s32.totalorder %s41, 0
      %p220 = por %p218, %p219
      %p221 = scmp.ne.s32.totalorder %s207, %s208
      %p222 = scmp.eq.s32.totalorder %s42, 7
      %p223 = por %p221, %p222
      %p225 = scmp.ne.s32.totalorder %s208, %s224
      %p226 = scmp.eq.s32.totalorder %s42, 0
      %p227 = por %p225, %p226
      %s228 = ssub.s32 %s44, %s51
      %p229 = scmp.eq.s32.totalorder %s228, 0
      %s231 = sadd.s32 %s230, 1
      %s232 = scalar_select %p229, %s230, %s231
      %p235 = pneg %p229
      %p236 = scmp.eq.s32.totalorder %s36, 7
      %p237 = por %p235, %p236
      %p238 = scmp.ne.s32.totalorder %s230, %s233
      %p239 = scmp.eq.s32.totalorder %s36, 0
      %p240 = por %p238, %p239
      %p241 = scmp.ne.s32.totalorder %s230, %s233
      %p242 = scmp.eq.s32.totalorder %s41, 7
      %p243 = por %p241, %p242
      %p244 = scmp.ne.s32.totalorder %s233, %s234
      %p245 = scmp.eq.s32.totalorder %s41, 0
      %p246 = por %p244, %p245
      %p247 = scmp.ne.s32.totalorder %s233, %s234
      %p248 = scmp.eq.s32.totalorder %s42, 7
      %p249 = por %p247, %p248
      %p251 = scmp.ne.s32.totalorder %s234, %s250
      %p252 = scmp.eq.s32.totalorder %s42, 0
      %p253 = por %p251, %p252
      %s254 = ssub.s32 %s44, %s51
      %p255 = scmp.eq.s32.totalorder %s254, 0
      %s257 = sadd.s32 %s256, 1
      %s258 = scalar_select %p255, %s256, %s257
      %p261 = pneg %p255
      %p262 = scmp.eq.s32.totalorder %s36, 7
      %p263 = por %p261, %p262
      %p264 = scmp.ne.s32.totalorder %s256, %s259
      %p265 = scmp.eq.s32.totalorder %s36, 0
      %p266 = por %p264, %p265
      %p267 = scmp.ne.s32.totalorder %s256, %s259
      %p268 = scmp.eq.s32.totalorder %s41, 7
      %p269 = por %p267, %p268
      %p270 = scmp.ne.s32.totalorder %s259, %s260
      %p271 = scmp.eq.s32.totalorder %s41, 0
      %p272 = por %p270, %p271
      %p273 = scmp.ne.s32.totalorder %s259, %s260
      %p274 = scmp.eq.s32.totalorder %s42, 7
      %p275 = por %p273, %p274
      %p277 = scmp.ne.s32.totalorder %s260, %s276
      %p278 = scmp.eq.s32.totalorder %s42, 0
      %p279 = por %p277, %p278
      %s280 = ssub.s32 %s44, %s51
      %p281 = scmp.eq.s32.totalorder %s280, 0
      %s283 = sadd.s32 %s282, 1
      %s284 = scalar_select %p281, %s282, %s283
      %p287 = pneg %p281
      %p288 = scmp.eq.s32.totalorder %s36, 7
      %p289 = por %p287, %p288
      %p290 = scmp.ne.s32.totalorder %s282, %s285
      %p291 = scmp.eq.s32.totalorder %s36, 0
      %p292 = por %p290, %p291
      %p293 = scmp.ne.s32.totalorder %s282, %s285
      %p294 = scmp.eq.s32.totalorder %s41, 7
      %p295 = por %p293, %p294
      %p296 = scmp.ne.s32.totalorder %s285, %s286
      %p297 = scmp.eq.s32.totalorder %s41, 0
      %p298 = por %p296, %p297
      %p299 = scmp.ne.s32.totalorder %s285, %s286
      %p300 = scmp.eq.s32.totalorder %s42, 7
      %p301 = por %p299, %p300
      %p303 = scmp.ne.s32.totalorder %s286, %s302
      %p304 = scmp.eq.s32.totalorder %s42, 0
      %p305 = por %p303, %p304
      %s306 = ssub.s32 %s44, %s51
      %p307 = scmp.eq.s32.totalorder %s306, 0
      %s309 = sadd.s32 %s308, 1
      %s310 = scalar_select %p307, %s308, %s309
      %p313 = pneg %p307
      %p314 = scmp.eq.s32.totalorder %s36, 7
      %p315 = por %p313, %p314
      %p316 = scmp.ne.s32.totalorder %s308, %s311
      %p317 = scmp.eq.s32.totalorder %s36, 0
      %p318 = por %p316, %p317
      %p319 = scmp.ne.s32.totalorder %s308, %s311
      %p320 = scmp.eq.s32.totalorder %s41, 7
      %p321 = por %p319, %p320
      %p322 = scmp.ne.s32.totalorder %s311, %s312
      %p323 = scmp.eq.s32.totalorder %s41, 0
      %p324 = por %p322, %p323
      %p325 = scmp.ne.s32.totalorder %s311, %s312
      %p326 = scmp.eq.s32.totalorder %s42, 7
      %p327 = por %p325, %p326
      %p329 = scmp.ne.s32.totalorder %s312, %s328
      %p330 = scmp.eq.s32.totalorder %s42, 0
      %p331 = por %p329, %p330
      %s332 = ssub.s32 %s44, %s51
      %p333 = scmp.eq.s32.totalorder %s332, 0
      %s335 = sadd.s32 %s334, 1
      %s336 = scalar_select %p333, %s334, %s335
      %p339 = pneg %p333
      %p340 = scmp.eq.s32.totalorder %s36, 7
      %p341 = por %p339, %p340
      %p342 = scmp.ne.s32.totalorder %s334, %s337
      %p343 = scmp.eq.s32.totalorder %s36, 0
      %p344 = por %p342, %p343
      %p345 = scmp.ne.s32.totalorder %s334, %s337
      %p346 = scmp.eq.s32.totalorder %s41, 7
      %p347 = por %p345, %p346
      %p348 = scmp.ne.s32.totalorder %s337, %s338
      %p349 = scmp.eq.s32.totalorder %s41, 0
      %p350 = por %p348, %p349
      %p351 = scmp.ne.s32.totalorder %s337, %s338
      %p352 = scmp.eq.s32.totalorder %s42, 7
      %p353 = por %p351, %p352
      %p355 = scmp.ne.s32.totalorder %s338, %s354
      %p356 = scmp.eq.s32.totalorder %s42, 0
      %p357 = por %p355, %p356
      %s358 = ssub.s32 %s44, %s51
      %p359 = scmp.eq.s32.totalorder %s358, 0
      %s361 = sadd.s32 %s360, 1
      %s362 = scalar_select %p359, %s360, %s361
      %p365 = pneg %p359
      %p366 = scmp.eq.s32.totalorder %s36, 7
      %p367 = por %p365, %p366
      %p368 = scmp.ne.s32.totalorder %s360, %s363
      %p369 = scmp.eq.s32.totalorder %s36, 0
      %p370 = por %p368, %p369
      %p371 = scmp.ne.s32.totalorder %s360, %s363
      %p372 = scmp.eq.s32.totalorder %s41, 7
      %p373 = por %p371, %p372
      %p374 = scmp.ne.s32.totalorder %s363, %s364
      %p375 = scmp.eq.s32.totalorder %s41, 0
      %p376 = por %p374, %p375
      %p377 = scmp.ne.s32.totalorder %s363, %s364
      %p378 = scmp.eq.s32.totalorder %s42, 7
      %p379 = por %p377, %p378
      %p381 = scmp.ne.s32.totalorder %s364, %s380
      %p382 = scmp.eq.s32.totalorder %s42, 0
      %p383 = por %p381, %p382
      %s384 = ssub.s32 %s44, %s51
      %p385 = scmp.eq.s32.totalorder %s384, 0
      %s387 = sadd.s32 %s386, 1
      %s388 = scalar_select %p385, %s386, %s387
      %p391 = pneg %p385
      %p392 = scmp.eq.s32.totalorder %s36, 7
      %p393 = por %p391, %p392
      %p394 = scmp.ne.s32.totalorder %s386, %s389
      %p395 = scmp.eq.s32.totalorder %s36, 0
      %p396 = por %p394, %p395
      %p397 = scmp.ne.s32.totalorder %s386, %s389
      %p398 = scmp.eq.s32.totalorder %s41, 7
      %p399 = por %p397, %p398
      %p400 = scmp.ne.s32.totalorder %s389, %s390
      %p401 = scmp.eq.s32.totalorder %s41, 0
      %p402 = por %p400, %p401
      %p403 = scmp.ne.s32.totalorder %s389, %s390
      %p404 = scmp.eq.s32.totalorder %s42, 7
      %p405 = por %p403, %p404
      %p407 = scmp.ne.s32.totalorder %s390, %s406
      %p408 = scmp.eq.s32.totalorder %s42, 0
      %p409 = por %p407, %p408
      %s410 = ssub.s32 %s44, %s51
      %p411 = scmp.eq.s32.totalorder %s410, 0
      %s413 = sadd.s32 %s412, 1
      %s414 = scalar_select %p411, %s412, %s413
      %p417 = pneg %p411
      %p418 = scmp.eq.s32.totalorder %s36, 7
      %p419 = por %p417, %p418
      %p420 = scmp.ne.s32.totalorder %s412, %s415
      %p421 = scmp.eq.s32.totalorder %s36, 0
      %p422 = por %p420, %p421
      %p423 = scmp.ne.s32.totalorder %s412, %s415
      %p424 = scmp.eq.s32.totalorder %s41, 7
      %p425 = por %p423, %p424
      %p426 = scmp.ne.s32.totalorder %s415, %s416
      %p427 = scmp.eq.s32.totalorder %s41, 0
      %p428 = por %p426, %p427
      %p429 = scmp.ne.s32.totalorder %s415, %s416
      %p430 = scmp.eq.s32.totalorder %s42, 7
      %p431 = por %p429, %p430
      %p433 = scmp.ne.s32.totalorder %s416, %s432
      %p434 = scmp.eq.s32.totalorder %s42, 0
      %p435 = por %p433, %p434
      %s436 = ssub.s32 %s44, %s51
      %p437 = scmp.eq.s32.totalorder %s436, 0
      %s439 = sadd.s32 %s438, 1
      %s440 = scalar_select %p437, %s438, %s439
      %p443 = pneg %p437
      %p444 = scmp.eq.s32.totalorder %s36, 7
      %p445 = por %p443, %p444
      %p446 = scmp.ne.s32.totalorder %s438, %s441
      %p447 = scmp.eq.s32.totalorder %s36, 0
      %p448 = por %p446, %p447
      %p449 = scmp.ne.s32.totalorder %s438, %s441
      %p450 = scmp.eq.s32.totalorder %s41, 7
      %p451 = por %p449, %p450
      %p452 = scmp.ne.s32.totalorder %s441, %s442
      %p453 = scmp.eq.s32.totalorder %s41, 0
      %p454 = por %p452, %p453
      %p455 = scmp.ne.s32.totalorder %s441, %s442
      %p456 = scmp.eq.s32.totalorder %s42, 7
      %p457 = por %p455, %p456
      %p459 = scmp.ne.s32.totalorder %s442, %s458
      %p460 = scmp.eq.s32.totalorder %s42, 0
      %p461 = por %p459, %p460
      %s462 = ssub.s32 %s44, %s51
      %p463 = scmp.eq.s32.totalorder %s462, 0
      %s465 = sadd.s32 %s464, 1
      %s466 = scalar_select %p463, %s464, %s465
      %p469 = pneg %p463
      %p470 = scmp.eq.s32.totalorder %s36, 7
      %p471 = por %p469, %p470
      %p472 = scmp.ne.s32.totalorder %s464, %s467
      %p473 = scmp.eq.s32.totalorder %s36, 0
      %p474 = por %p472, %p473
      %p475 = scmp.ne.s32.totalorder %s464, %s467
      %p476 = scmp.eq.s32.totalorder %s41, 7
      %p477 = por %p475, %p476
      %p478 = scmp.ne.s32.totalorder %s467, %s468
      %p479 = scmp.eq.s32.totalorder %s41, 0
      %p480 = por %p478, %p479
      %p481 = scmp.ne.s32.totalorder %s467, %s468
      %p482 = scmp.eq.s32.totalorder %s42, 7
      %p483 = por %p481, %p482
      %p485 = scmp.ne.s32.totalorder %s468, %s484
      %p486 = scmp.eq.s32.totalorder %s42, 0
      %p487 = por %p485, %p486
      %s488 = ssub.s32 %s44, %s51
      %p489 = scmp.eq.s32.totalorder %s488, 0
      %s491 = sadd.s32 %s490, 1
      %s492 = scalar_select %p489, %s490, %s491
      %p495 = pneg %p489
      %p496 = scmp.eq.s32.totalorder %s36, 7
      %p497 = por %p495, %p496
      %p498 = scmp.ne.s32.totalorder %s490, %s493
      %p499 = scmp.eq.s32.totalorder %s36, 0
      %p500 = por %p498, %p499
      %p501 = scmp.ne.s32.totalorder %s490, %s493
      %p502 = scmp.eq.s32.totalorder %s41, 7
      %p503 = por %p501, %p502
      %p504 = scmp.ne.s32.totalorder %s493, %s494
      %p505 = scmp.eq.s32.totalorder %s41, 0
      %p506 = por %p504, %p505
      %p507 = scmp.ne.s32.totalorder %s493, %s494
      %p508 = scmp.eq.s32.totalorder %s42, 7
      %p509 = por %p507, %p508
      %p511 = scmp.ne.s32.totalorder %s494, %s510
      %p512 = scmp.eq.s32.totalorder %s42, 0
      %p513 = por %p511, %p512
      %s514 = ssub.s32 %s44, %s51
      %p515 = scmp.eq.s32.totalorder %s514, 0
      %s517 = sadd.s32 %s516, 1
      %s518 = scalar_select %p515, %s516, %s517
      %p521 = pneg %p515
      %p522 = scmp.eq.s32.totalorder %s36, 7
      %p523 = por %p521, %p522
      %p524 = scmp.ne.s32.totalorder %s516, %s519
      %p525 = scmp.eq.s32.totalorder %s36, 0
      %p526 = por %p524, %p525
      %p527 = scmp.ne.s32.totalorder %s516, %s519
      %p528 = scmp.eq.s32.totalorder %s41, 7
      %p529 = por %p527, %p528
      %p530 = scmp.ne.s32.totalorder %s519, %s520
      %p531 = scmp.eq.s32.totalorder %s41, 0
      %p532 = por %p530, %p531
      %p533 = scmp.ne.s32.totalorder %s519, %s520
      %p534 = scmp.eq.s32.totalorder %s42, 7
      %p535 = por %p533, %p534
      %p537 = scmp.ne.s32.totalorder %s520, %s536
      %p538 = scmp.eq.s32.totalorder %s42, 0
      %p539 = por %p537, %p538
      %s540 = ssub.s32 %s44, %s51
      %p541 = scmp.eq.s32.totalorder %s540, 0
      %s543 = sadd.s32 %s542, 1
      %s544 = scalar_select %p541, %s542, %s543
      %p547 = pneg %p541
      %p548 = scmp.eq.s32.totalorder %s36, 7
      %p549 = por %p547, %p548
      %p550 = scmp.ne.s32.totalorder %s542, %s545
      %p551 = scmp.eq.s32.totalorder %s36, 0
      %p552 = por %p550, %p551
      %p553 = scmp.ne.s32.totalorder %s542, %s545
      %p554 = scmp.eq.s32.totalorder %s41, 7
      %p555 = por %p553, %p554
      %p556 = scmp.ne.s32.totalorder %s545, %s546
      %p557 = scmp.eq.s32.totalorder %s41, 0
      %p558 = por %p556, %p557
      %p559 = scmp.ne.s32.totalorder %s545, %s546
      %p560 = scmp.eq.s32.totalorder %s42, 7
      %p561 = por %p559, %p560
      %p563 = scmp.ne.s32.totalorder %s546, %s562
      %p564 = scmp.eq.s32.totalorder %s42, 0
      %p565 = por %p563, %p564
      %s566 = ssub.s32 %s43, %s55
      %p567 = scmp.eq.s32.totalorder %s566, 0
      %s569 = sadd.s32 %s568, 1
      %s570 = scalar_select %p567, %s568, %s569
      %p573 = pneg %p567
      %p574 = scmp.eq.s32.totalorder %s36, 7
      %p575 = por %p573, %p574
      %p576 = scmp.ne.s32.totalorder %s568, %s571
      %p577 = scmp.eq.s32.totalorder %s36, 0
      %p578 = por %p576, %p577
      %p579 = scmp.ne.s32.totalorder %s568, %s571
      %p580 = scmp.eq.s32.totalorder %s41, 7
      %p581 = por %p579, %p580
      %p582 = scmp.ne.s32.totalorder %s571, %s572
      %p583 = scmp.eq.s32.totalorder %s41, 0
      %p584 = por %p582, %p583
      %p585 = scmp.ne.s32.totalorder %s571, %s572
      %p586 = scmp.eq.s32.totalorder %s42, 7
      %p587 = por %p585, %p586
      %p589 = scmp.ne.s32.totalorder %s572, %s588
      %p590 = scmp.eq.s32.totalorder %s42, 0
      %p591 = por %p589, %p590
      %p592 = scmp.le.s32.totalorder 1, %s36
      %p593 = scmp.lt.s32.totalorder %s36, 9
      %p594 = pnand %p592, %p593
      %p595 = pneg %p594
      // Predicated region
      $region9: #{tpu_custom_call.1} parent=5 // pred_check
        _
      $region10: #{tpu_custom_call.1} parent=5 // pred_check_branch
        %597 = sbr.rel (%p594) target = $region12
      $region11: #{tpu_custom_call.1} parent=5 // pred_region
        %s598 = ssub.s32 %s36, 1
        // Predicated region
        $region13: #{tpu_custom_call.1} parent=11 // pred_check
          %p599 = pneg %p121
        $region14: #{tpu_custom_call.1} parent=11 // pred_check_branch
          %601 = sbr.rel (%p599) target = $region16
        $region15: #{tpu_custom_call.1} parent=11 // pred_region
          %603 = vsyncadd [#allocation6], 0
          %s605 = sshll.u32 %s2, 4
          %s606 = int_to_ptr.hbm [resolvable:$true] %s605
          %s607 = sshll.u32 [#allocation7], 4
          %s608 = int_to_ptr.vmem [resolvable:$true] %s607
          %610 = dma.hbm_to_vmem [thread:$0]  %s606, 16, %s608, [#allocation6]
        $region16: #{tpu_custom_call.1} parent=11 // pred_fallthru
          _
        // Predicated region
        $region17: #{tpu_custom_call.1} parent=11 // pred_check
          %p611 = pneg %p142
        $region18: #{tpu_custom_call.1} parent=11 // pred_check_branch
          %613 = sbr.rel (%p611) target = $region20
        $region19: #{tpu_custom_call.1} parent=11 // pred_region
          %615 = vsyncadd [#allocation9], 0
          %s617 = sshll.u32 %s3, 4
          %s618 = int_to_ptr.hbm [resolvable:$true] %s617
          %s619 = sshll.u32 [#allocation8], 4
          %s620 = int_to_ptr.vmem [resolvable:$true] %s619
          %622 = dma.hbm_to_vmem [thread:$0]  %s618, 16, %s620, [#allocation9]
        $region20: #{tpu_custom_call.1} parent=11 // pred_fallthru
          _
      $region12: #{tpu_custom_call.1} parent=5 // pred_fallthru
        _
      %p623 = scmp.lt.s32.totalorder %s36, 8
      // Predicated region
      $region21: #{tpu_custom_call.1} parent=5 // pred_check
        %p624 = pneg %p623
      $region22: #{tpu_custom_call.1} parent=5 // pred_check_branch
        %626 = sbr.rel (%p624) target = $region24
      $region23: #{tpu_custom_call.1} parent=5 // pred_region
        // Predicated region
        $region25: #{tpu_custom_call.1} parent=23 // pred_check
          %p627 = pneg %p68
        $region26: #{tpu_custom_call.1} parent=23 // pred_check_branch
          %629 = sbr.rel (%p627) target = $region28
        $region27: #{tpu_custom_call.1} parent=23 // pred_region
          %s630 = sand.u32 %s36, 1
          %s631 = scalar_lea.sflag [#allocation3], %s630
          %s632 = sand.u32 %s58, 1
          %s633 = smul.addr %s632, 8
          %s634 = scalar_lea.vmem [#allocation2], %s633
          %636 = vsyncadd %s631, 0
          %s637 = smul.addr %s43, 8
          %s638 = scalar_lea.hbm %s0, %s637
          %s640 = sshll.u32 %s638, 4
          %s641 = int_to_ptr.hbm [resolvable:$true] %s640
          %s642 = sshll.u32 %s634, 4
          %s643 = int_to_ptr.vmem [resolvable:$true] %s642
          %645 = dma.hbm_to_vmem [thread:$0]  %s641, 128, %s643, %s631
        $region28: #{tpu_custom_call.1} parent=23 // pred_fallthru
          _
        // Predicated region
        $region29: #{tpu_custom_call.1} parent=23 // pred_check
          %p646 = pneg %p94
        $region30: #{tpu_custom_call.1} parent=23 // pred_check_branch
          %648 = sbr.rel (%p646) target = $region32
        $region31: #{tpu_custom_call.1} parent=23 // pred_region
          %s649 = sand.u32 %s36, 1
          %s650 = scalar_lea.sflag [#allocation6], %s649
          %s651 = sand.u32 %s84, 1
          %s652 = scalar_lea.vmem [#allocation5], %s651
          %654 = vsyncadd %s650, 0
          %s655 = scalar_lea.hbm %s1, %s43
          %s657 = sshll.u32 %s655, 4
          %s658 = int_to_ptr.hbm [resolvable:$true] %s657
          %s659 = sshll.u32 %s652, 4
          %s660 = int_to_ptr.vmem [resolvable:$true] %s659
          %662 = dma.hbm_to_vmem [thread:$0]  %s658, 16, %s660, %s650
        $region32: #{tpu_custom_call.1} parent=23 // pred_fallthru
          _
        // Predicated region
        $region33: #{tpu_custom_call.1} parent=23 // pred_check
          %p663 = pneg %p162
        $region34: #{tpu_custom_call.1} parent=23 // pred_check_branch
          %665 = sbr.rel (%p663) target = $region36
        $region35: #{tpu_custom_call.1} parent=23 // pred_region
          %s666 = sand.u32 %s36, 1
          %s667 = scalar_lea.sflag [#allocation3], %s666
          %s668 = sand.u32 %s152, 1
          %s669 = smul.addr %s668, 64
          %s670 = scalar_lea.vmem [#allocation10], %s669
          %672 = vsyncadd %s667, 0
          %s673 = smul.addr %s44, 16
          %s674 = smul.addr %s673, 4
          %s675 = scalar_lea.hbm %s4, %s674
          %s676 = sshll.u32 %s675, 4
          %s677 = int_to_ptr.hbm [resolvable:$true] %s676
          %s678 = sshll.u32 %s670, 4
          %s679 = int_to_ptr.vmem [resolvable:$true] %s678
          %684 = dma.hbm_to_vmem [thread:$0]  %s677, 1024, %s679, %s667, 64, 64, 4
        $region36: #{tpu_custom_call.1} parent=23 // pred_fallthru
          _
        // Predicated region
        $region37: #{tpu_custom_call.1} parent=23 // pred_check
          %p685 = pneg %p188
        $region38: #{tpu_custom_call.1} parent=23 // pred_check_branch
          %687 = sbr.rel (%p685) target = $region40
        $region39: #{tpu_custom_call.1} parent=23 // pred_region
          %p688 = scmp.lt.s32.totalorder %s44, 1
          %s689 = scalar_select %p688, %s44, 1
          %s690 = scalar_lea.vmem %s5, %s689
        $region40: #{tpu_custom_call.1} parent=23 // pred_fallthru
          _
        // Predicated region
        $region41: #{tpu_custom_call.1} parent=23 // pred_check
          %p691 = pneg %p214
        $region42: #{tpu_custom_call.1} parent=23 // pred_check_branch
          %693 = sbr.rel (%p691) target = $region44
        $region43: #{tpu_custom_call.1} parent=23 // pred_region
          %s694 = sand.u32 %s36, 1
          %s695 = scalar_lea.sflag [#allocation6], %s694
          %s696 = sand.u32 %s204, 1
          %s697 = smul.addr %s696, 64
          %s698 = scalar_lea.vmem [#allocation11], %s697
          %700 = vsyncadd %s695, 0
          %s701 = smul.addr %s44, 16
          %s702 = smul.addr %s701, 4
          %s703 = scalar_lea.hbm %s6, %s702
          %s704 = sshll.u32 %s703, 4
          %s705 = int_to_ptr.hbm [resolvable:$true] %s704
          %s706 = sshll.u32 %s698, 4
          %s707 = int_to_ptr.vmem [resolvable:$true] %s706
          %712 = dma.hbm_to_vmem [thread:$0]  %s705, 1024, %s707, %s695, 64, 64, 4
        $region44: #{tpu_custom_call.1} parent=23 // pred_fallthru
          _
        // Predicated region
        $region45: #{tpu_custom_call.1} parent=23 // pred_check
          %p713 = pneg %p240
        $region46: #{tpu_custom_call.1} parent=23 // pred_check_branch
          %715 = sbr.rel (%p713) target = $region48
        $region47: #{tpu_custom_call.1} parent=23 // pred_region
          %s716 = sand.u32 %s36, 1
          %s717 = scalar_lea.sflag [#allocation3], %s716
          %s718 = sand.u32 %s230, 1
          %s719 = scalar_lea.vmem [#allocation12], %s718
          %721 = vsyncadd %s717, 0
          %s722 = scalar_lea.hbm %s7, %s44
          %s724 = sshll.u32 %s722, 4
          %s725 = int_to_ptr.hbm [resolvable:$true] %s724
          %s726 = sshll.u32 %s719, 4
          %s727 = int_to_ptr.vmem [resolvable:$true] %s726
          %729 = dma.hbm_to_vmem [thread:$0]  %s725, 16, %s727, %s717
        $region48: #{tpu_custom_call.1} parent=23 // pred_fallthru
          _
        // Predicated region
        $region49: #{tpu_custom_call.1} parent=23 // pred_check
          %p730 = pneg %p266
        $region50: #{tpu_custom_call.1} parent=23 // pred_check_branch
          %732 = sbr.rel (%p730) target = $region52
        $region51: #{tpu_custom_call.1} parent=23 // pred_region
          %s733 = sand.u32 %s36, 1
          %s734 = scalar_lea.sflag [#allocation6], %s733
          %s735 = sand.u32 %s256, 1
          %s736 = smul.addr %s735, 64
          %s737 = scalar_lea.vmem [#allocation13], %s736
          %739 = vsyncadd %s734, 0
          %s740 = smul.addr %s44, 16
          %s741 = smul.addr %s740, 4
          %s742 = scalar_lea.hbm %s8, %s741
          %s743 = sshll.u32 %s742, 4
          %s744 = int_to_ptr.hbm [resolvable:$true] %s743
          %s745 = sshll.u32 %s737, 4
          %s746 = int_to_ptr.vmem [resolvable:$true] %s745
          %751 = dma.hbm_to_vmem [thread:$0]  %s744, 1024, %s746, %s734, 64, 64, 4
        $region52: #{tpu_custom_call.1} parent=23 // pred_fallthru
          _
        // Predicated region
        $region53: #{tpu_custom_call.1} parent=23 // pred_check
          %p752 = pneg %p292
        $region54: #{tpu_custom_call.1} parent=23 // pred_check_branch
          %754 = sbr.rel (%p752) target = $region56
        $region55: #{tpu_custom_call.1} parent=23 // pred_region
          %p755 = scmp.lt.s32.totalorder %s44, 1
          %s756 = scalar_select %p755, %s44, 1
          %s757 = scalar_lea.vmem %s9, %s756
        $region56: #{tpu_custom_call.1} parent=23 // pred_fallthru
          _
        // Predicated region
        $region57: #{tpu_custom_call.1} parent=23 // pred_check
          %p758 = pneg %p318
        $region58: #{tpu_custom_call.1} parent=23 // pred_check_branch
          %760 = sbr.rel (%p758) target = $region60
        $region59: #{tpu_custom_call.1} parent=23 // pred_region
          %s761 = sand.u32 %s36, 1
          %s762 = scalar_lea.sflag [#allocation3], %s761
          %s763 = sand.u32 %s308, 1
          %s764 = smul.addr %s763, 64
          %s765 = scalar_lea.vmem [#allocation14], %s764
          %767 = vsyncadd %s762, 0
          %s768 = smul.addr %s44, 16
          %s769 = smul.addr %s768, 4
          %s770 = scalar_lea.hbm %s10, %s769
          %s771 = sshll.u32 %s770, 4
          %s772 = int_to_ptr.hbm [resolvable:$true] %s771
          %s773 = sshll.u32 %s765, 4
          %s774 = int_to_ptr.vmem [resolvable:$true] %s773
          %779 = dma.hbm_to_vmem [thread:$0]  %s772, 1024, %s774, %s762, 64, 64, 4
        $region60: #{tpu_custom_call.1} parent=23 // pred_fallthru
          _
        // Predicated region
        $region61: #{tpu_custom_call.1} parent=23 // pred_check
          %p780 = pneg %p344
        $region62: #{tpu_custom_call.1} parent=23 // pred_check_branch
          %782 = sbr.rel (%p780) target = $region64
        $region63: #{tpu_custom_call.1} parent=23 // pred_region
          %p783 = scmp.lt.s32.totalorder %s44, 1
          %s784 = scalar_select %p783, %s44, 1
          %s785 = scalar_lea.vmem %s11, %s784
        $region64: #{tpu_custom_call.1} parent=23 // pred_fallthru
          _
        // Predicated region
        $region65: #{tpu_custom_call.1} parent=23 // pred_check
          %p786 = pneg %p370
        $region66: #{tpu_custom_call.1} parent=23 // pred_check_branch
          %788 = sbr.rel (%p786) target = $region68
        $region67: #{tpu_custom_call.1} parent=23 // pred_region
          %s789 = sand.u32 %s36, 1
          %s790 = scalar_lea.sflag [#allocation6], %s789
          %s791 = sand.u32 %s360, 1
          %s792 = scalar_lea.vmem [#allocation15], %s791
          %794 = vsyncadd %s790, 0
          %s795 = scalar_lea.hbm %s12, %s44
          %s797 = sshll.u32 %s795, 4
          %s798 = int_to_ptr.hbm [resolvable:$true] %s797
          %s799 = sshll.u32 %s792, 4
          %s800 = int_to_ptr.vmem [resolvable:$true] %s799
          %802 = dma.hbm_to_vmem [thread:$0]  %s798, 16, %s800, %s790
        $region68: #{tpu_custom_call.1} parent=23 // pred_fallthru
          _
        // Predicated region
        $region69: #{tpu_custom_call.1} parent=23 // pred_check
          %p803 = pneg %p396
        $region70: #{tpu_custom_call.1} parent=23 // pred_check_branch
          %805 = sbr.rel (%p803) target = $region72
        $region71: #{tpu_custom_call.1} parent=23 // pred_region
          %p806 = scmp.lt.s32.totalorder %s44, 1
          %s807 = scalar_select %p806, %s44, 1
          %s808 = scalar_lea.vmem %s13, %s807
        $region72: #{tpu_custom_call.1} parent=23 // pred_fallthru
          _
        // Predicated region
        $region73: #{tpu_custom_call.1} parent=23 // pred_check
          %p809 = pneg %p422
        $region74: #{tpu_custom_call.1} parent=23 // pred_check_branch
          %811 = sbr.rel (%p809) target = $region76
        $region75: #{tpu_custom_call.1} parent=23 // pred_region
          %s812 = sand.u32 %s36, 1
          %s813 = scalar_lea.sflag [#allocation3], %s812
          %s814 = sand.u32 %s412, 1
          %s815 = smul.addr %s814, 128
          %s816 = scalar_lea.vmem [#allocation16], %s815
          %818 = vsyncadd %s813, 0
          %s819 = smul.addr %s44, 32
          %s820 = smul.addr %s819, 4
          %s821 = scalar_lea.hbm %s14, %s820
          %s822 = sshll.u32 %s821, 4
          %s823 = int_to_ptr.hbm [resolvable:$true] %s822
          %s824 = sshll.u32 %s816, 4
          %s825 = int_to_ptr.vmem [resolvable:$true] %s824
          %830 = dma.hbm_to_vmem [thread:$0]  %s823, 2048, %s825, %s813, 128, 128, 8
        $region76: #{tpu_custom_call.1} parent=23 // pred_fallthru
          _
        // Predicated region
        $region77: #{tpu_custom_call.1} parent=23 // pred_check
          %p831 = pneg %p448
        $region78: #{tpu_custom_call.1} parent=23 // pred_check_branch
          %833 = sbr.rel (%p831) target = $region80
        $region79: #{tpu_custom_call.1} parent=23 // pred_region
          %p834 = scmp.lt.s32.totalorder %s44, 1
          %s835 = scalar_select %p834, %s44, 1
          %s836 = smul.addr %s835, 2
          %s837 = scalar_lea.vmem %s15, %s836
        $region80: #{tpu_custom_call.1} parent=23 // pred_fallthru
          _
        // Predicated region
        $region81: #{tpu_custom_call.1} parent=23 // pred_check
          %p838 = pneg %p474
        $region82: #{tpu_custom_call.1} parent=23 // pred_check_branch
          %840 = sbr.rel (%p838) target = $region84
        $region83: #{tpu_custom_call.1} parent=23 // pred_region
          %s841 = sand.u32 %s36, 1
          %s842 = scalar_lea.sflag [#allocation6], %s841
          %s843 = sand.u32 %s464, 1
          %s844 = smul.addr %s843, 128
          %s845 = scalar_lea.vmem [#allocation17], %s844
          %847 = vsyncadd %s842, 0
          %s848 = smul.addr %s44, 32
          %s849 = smul.addr %s848, 4
          %s850 = scalar_lea.hbm %s16, %s849
          %s851 = sshll.u32 %s850, 4
          %s852 = int_to_ptr.hbm [resolvable:$true] %s851
          %s853 = sshll.u32 %s845, 4
          %s854 = int_to_ptr.vmem [resolvable:$true] %s853
          %859 = dma.hbm_to_vmem [thread:$0]  %s852, 2048, %s854, %s842, 64, 64, 4
        $region84: #{tpu_custom_call.1} parent=23 // pred_fallthru
          _
        // Predicated region
        $region85: #{tpu_custom_call.1} parent=23 // pred_check
          %p860 = pneg %p500
        $region86: #{tpu_custom_call.1} parent=23 // pred_check_branch
          %862 = sbr.rel (%p860) target = $region88
        $region87: #{tpu_custom_call.1} parent=23 // pred_region
          %p863 = scmp.lt.s32.totalorder %s44, 1
          %s864 = scalar_select %p863, %s44, 1
          %s865 = scalar_lea.vmem %s17, %s864
        $region88: #{tpu_custom_call.1} parent=23 // pred_fallthru
          _
        // Predicated region
        $region89: #{tpu_custom_call.1} parent=23 // pred_check
          %p866 = pneg %p526
        $region90: #{tpu_custom_call.1} parent=23 // pred_check_branch
          %868 = sbr.rel (%p866) target = $region92
        $region91: #{tpu_custom_call.1} parent=23 // pred_region
          %p869 = scmp.lt.s32.totalorder %s44, 1
          %s870 = scalar_select %p869, %s44, 1
          %s871 = scalar_lea.vmem %s18, %s870
        $region92: #{tpu_custom_call.1} parent=23 // pred_fallthru
          _
        // Predicated region
        $region93: #{tpu_custom_call.1} parent=23 // pred_check
          %p872 = pneg %p552
        $region94: #{tpu_custom_call.1} parent=23 // pred_check_branch
          %874 = sbr.rel (%p872) target = $region96
        $region95: #{tpu_custom_call.1} parent=23 // pred_region
          %p875 = scmp.lt.s32.totalorder %s44, 1
          %s876 = scalar_select %p875, %s44, 1
          %s877 = scalar_lea.vmem %s19, %s876
        $region96: #{tpu_custom_call.1} parent=23 // pred_fallthru
          _
      $region24: #{tpu_custom_call.1} parent=5 // pred_fallthru
        _
      %p878 = scmp.le.s32.totalorder 1, %s36
      %p879 = scmp.lt.s32.totalorder %s36, 9
      %p880 = pnand %p878, %p879
      %p881 = pneg %p880
      // Predicated region
      $region97: #{tpu_custom_call.1} parent=5 // pred_check
        _
      $region98: #{tpu_custom_call.1} parent=5 // pred_check_branch
        %883 = sbr.rel (%p880) target = $region100
      $region99: #{tpu_custom_call.1} parent=5 // pred_region
        %s884 = ssub.s32 %s36, 1
        %s885 = sand.u32 %s41, 1
        %s886 = scalar_lea.sflag [#allocation3], %s885
        %s887 = sand.u32 %s61, 1
        %s888 = smul.addr %s887, 8
        %s889 = scalar_lea.vmem [#allocation2], %s888
        // Predicated region
        $region101: #{tpu_custom_call.1} parent=99 // pred_check
          %p890 = pneg %p74
        $region102: #{tpu_custom_call.1} parent=99 // pred_check_branch
          %892 = sbr.rel (%p890) target = $region104
        $region103: #{tpu_custom_call.1} parent=99 // pred_region
          %894 = dma.done %s886, 128
        $region104: #{tpu_custom_call.1} parent=99 // pred_fallthru
          _
        %s895 = sand.u32 %s41, 1
        %s896 = scalar_lea.sflag [#allocation6], %s895
        %s897 = sand.u32 %s87, 1
        %s898 = scalar_lea.vmem [#allocation5], %s897
        // Predicated region
        $region105: #{tpu_custom_call.1} parent=99 // pred_check
          %p899 = pneg %p100
        $region106: #{tpu_custom_call.1} parent=99 // pred_check_branch
          %901 = sbr.rel (%p899) target = $region108
        $region107: #{tpu_custom_call.1} parent=99 // pred_region
          %903 = dma.done %s896, 16
        $region108: #{tpu_custom_call.1} parent=99 // pred_fallthru
          _
        // Predicated region
        $region109: #{tpu_custom_call.1} parent=99 // pred_check
          %p904 = pneg %p121
        $region110: #{tpu_custom_call.1} parent=99 // pred_check_branch
          %906 = sbr.rel (%p904) target = $region112
        $region111: #{tpu_custom_call.1} parent=99 // pred_region
          %908 = dma.done [#allocation6], 16
        $region112: #{tpu_custom_call.1} parent=99 // pred_fallthru
          _
        // Predicated region
        $region113: #{tpu_custom_call.1} parent=99 // pred_check
          %p909 = pneg %p142
        $region114: #{tpu_custom_call.1} parent=99 // pred_check_branch
          %911 = sbr.rel (%p909) target = $region116
        $region115: #{tpu_custom_call.1} parent=99 // pred_region
          %913 = dma.done [#allocation9], 16
        $region116: #{tpu_custom_call.1} parent=99 // pred_fallthru
          _
        %s914 = sand.u32 %s41, 1
        %s915 = scalar_lea.sflag [#allocation3], %s914
        %s916 = sand.u32 %s155, 1
        %s917 = smul.addr %s916, 64
        %s918 = scalar_lea.vmem [#allocation10], %s917
        // Predicated region
        $region117: #{tpu_custom_call.1} parent=99 // pred_check
          %p919 = pneg %p168
        $region118: #{tpu_custom_call.1} parent=99 // pred_check_branch
          %921 = sbr.rel (%p919) target = $region120
        $region119: #{tpu_custom_call.1} parent=99 // pred_region
          %923 = dma.done %s915, 1024
        $region120: #{tpu_custom_call.1} parent=99 // pred_fallthru
          _
        %s924 = sand.u32 %s41, 1
        %s925 = scalar_lea.sflag [#allocation6], %s924
        %s926 = sand.u32 %s207, 1
        %s927 = smul.addr %s926, 64
        %s928 = scalar_lea.vmem [#allocation11], %s927
        // Predicated region
        $region121: #{tpu_custom_call.1} parent=99 // pred_check
          %p929 = pneg %p220
        $region122: #{tpu_custom_call.1} parent=99 // pred_check_branch
          %931 = sbr.rel (%p929) target = $region124
        $region123: #{tpu_custom_call.1} parent=99 // pred_region
          %933 = dma.done %s925, 1024
        $region124: #{tpu_custom_call.1} parent=99 // pred_fallthru
          _
        %s934 = sand.u32 %s41, 1
        %s935 = scalar_lea.sflag [#allocation3], %s934
        %s936 = sand.u32 %s233, 1
        %s937 = scalar_lea.vmem [#allocation12], %s936
        // Predicated region
        $region125: #{tpu_custom_call.1} parent=99 // pred_check
          %p938 = pneg %p246
        $region126: #{tpu_custom_call.1} parent=99 // pred_check_branch
          %940 = sbr.rel (%p938) target = $region128
        $region127: #{tpu_custom_call.1} parent=99 // pred_region
          %942 = dma.done %s935, 16
        $region128: #{tpu_custom_call.1} parent=99 // pred_fallthru
          _
        %s943 = sand.u32 %s41, 1
        %s944 = scalar_lea.sflag [#allocation6], %s943
        %s945 = sand.u32 %s259, 1
        %s946 = smul.addr %s945, 64
        %s947 = scalar_lea.vmem [#allocation13], %s946
        // Predicated region
        $region129: #{tpu_custom_call.1} parent=99 // pred_check
          %p948 = pneg %p272
        $region130: #{tpu_custom_call.1} parent=99 // pred_check_branch
          %950 = sbr.rel (%p948) target = $region132
        $region131: #{tpu_custom_call.1} parent=99 // pred_region
          %952 = dma.done %s944, 1024
        $region132: #{tpu_custom_call.1} parent=99 // pred_fallthru
          _
        %s953 = sand.u32 %s41, 1
        %s954 = scalar_lea.sflag [#allocation3], %s953
        %s955 = sand.u32 %s311, 1
        %s956 = smul.addr %s955, 64
        %s957 = scalar_lea.vmem [#allocation14], %s956
        // Predicated region
        $region133: #{tpu_custom_call.1} parent=99 // pred_check
          %p958 = pneg %p324
        $region134: #{tpu_custom_call.1} parent=99 // pred_check_branch
          %960 = sbr.rel (%p958) target = $region136
        $region135: #{tpu_custom_call.1} parent=99 // pred_region
          %962 = dma.done %s954, 1024
        $region136: #{tpu_custom_call.1} parent=99 // pred_fallthru
          _
        %s963 = sand.u32 %s41, 1
        %s964 = scalar_lea.sflag [#allocation6], %s963
        %s965 = sand.u32 %s363, 1
        %s966 = scalar_lea.vmem [#allocation15], %s965
        // Predicated region
        $region137: #{tpu_custom_call.1} parent=99 // pred_check
          %p967 = pneg %p376
        $region138: #{tpu_custom_call.1} parent=99 // pred_check_branch
          %969 = sbr.rel (%p967) target = $region140
        $region139: #{tpu_custom_call.1} parent=99 // pred_region
          %971 = dma.done %s964, 16
        $region140: #{tpu_custom_call.1} parent=99 // pred_fallthru
          _
        %s972 = sand.u32 %s41, 1
        %s973 = scalar_lea.sflag [#allocation3], %s972
        %s974 = sand.u32 %s415, 1
        %s975 = smul.addr %s974, 128
        %s976 = scalar_lea.vmem [#allocation16], %s975
        // Predicated region
        $region141: #{tpu_custom_call.1} parent=99 // pred_check
          %p977 = pneg %p428
        $region142: #{tpu_custom_call.1} parent=99 // pred_check_branch
          %979 = sbr.rel (%p977) target = $region144
        $region143: #{tpu_custom_call.1} parent=99 // pred_region
          %981 = dma.done %s973, 2048
        $region144: #{tpu_custom_call.1} parent=99 // pred_fallthru
          _
        %s982 = sand.u32 %s41, 1
        %s983 = scalar_lea.sflag [#allocation6], %s982
        %s984 = sand.u32 %s467, 1
        %s985 = smul.addr %s984, 128
        %s986 = scalar_lea.vmem [#allocation17], %s985
        // Predicated region
        $region145: #{tpu_custom_call.1} parent=99 // pred_check
          %p987 = pneg %p480
        $region146: #{tpu_custom_call.1} parent=99 // pred_check_branch
          %989 = sbr.rel (%p987) target = $region148
        $region147: #{tpu_custom_call.1} parent=99 // pred_region
          %991 = dma.done %s983, 2048
        $region148: #{tpu_custom_call.1} parent=99 // pred_fallthru
          _
        %s992 = sand.u32 %s41, 1
        %s993 = scalar_lea.sflag [#allocation3], %s992
        %s994 = sand.u32 %s61, 1
        %s995 = smul.addr %s994, 8
        %s996 = scalar_lea.vmem [#allocation2], %s995
        %p997 = pneg %p74
        %p998 = pneg %p71
        %s999 = sand.u32 %s41, 1
        %s1000 = scalar_lea.sflag [#allocation6], %s999
        %s1001 = sand.u32 %s87, 1
        %s1002 = scalar_lea.vmem [#allocation5], %s1001
        %p1003 = pneg %p100
        %p1004 = pneg %p97
        %p1005 = pneg %p121
        %p1006 = pneg %p118
        %p1007 = pneg %p142
        %p1008 = pneg %p139
        %s1009 = sand.u32 %s41, 1
        %s1010 = scalar_lea.sflag [#allocation3], %s1009
        %s1011 = sand.u32 %s155, 1
        %s1012 = smul.addr %s1011, 64
        %s1013 = scalar_lea.vmem [#allocation10], %s1012
        %p1014 = pneg %p168
        %p1015 = pneg %p165
        %p1016 = scmp.lt.s32.totalorder %s46, 1
        %s1017 = scalar_select %p1016, %s46, 1
        %s1018 = scalar_lea.vmem %s5, %s1017
        %p1019 = pneg %p194
        %p1020 = pneg %p191
        %s1021 = sand.u32 %s41, 1
        %s1022 = scalar_lea.sflag [#allocation6], %s1021
        %s1023 = sand.u32 %s207, 1
        %s1024 = smul.addr %s1023, 64
        %s1025 = scalar_lea.vmem [#allocation11], %s1024
        %p1026 = pneg %p220
        %p1027 = pneg %p217
        %s1028 = sand.u32 %s41, 1
        %s1029 = scalar_lea.sflag [#allocation3], %s1028
        %s1030 = sand.u32 %s233, 1
        %s1031 = scalar_lea.vmem [#allocation12], %s1030
        %p1032 = pneg %p246
        %p1033 = pneg %p243
        %s1034 = sand.u32 %s41, 1
        %s1035 = scalar_lea.sflag [#allocation6], %s1034
        %s1036 = sand.u32 %s259, 1
        %s1037 = smul.addr %s1036, 64
        %s1038 = scalar_lea.vmem [#allocation13], %s1037
        %p1039 = pneg %p272
        %p1040 = pneg %p269
        %p1041 = scmp.lt.s32.totalorder %s46, 1
        %s1042 = scalar_select %p1041, %s46, 1
        %s1043 = scalar_lea.vmem %s9, %s1042
        %p1044 = pneg %p298
        %p1045 = pneg %p295
        %s1046 = sand.u32 %s41, 1
        %s1047 = scalar_lea.sflag [#allocation3], %s1046
        %s1048 = sand.u32 %s311, 1
        %s1049 = smul.addr %s1048, 64
        %s1050 = scalar_lea.vmem [#allocation14], %s1049
        %p1051 = pneg %p324
        %p1052 = pneg %p321
        %p1053 = scmp.lt.s32.totalorder %s46, 1
        %s1054 = scalar_select %p1053, %s46, 1
        %s1055 = scalar_lea.vmem %s11, %s1054
        %p1056 = pneg %p350
        %p1057 = pneg %p347
        %s1058 = sand.u32 %s41, 1
        %s1059 = scalar_lea.sflag [#allocation6], %s1058
        %s1060 = sand.u32 %s363, 1
        %s1061 = scalar_lea.vmem [#allocation15], %s1060
        %p1062 = pneg %p376
        %p1063 = pneg %p373
        %p1064 = scmp.lt.s32.totalorder %s46, 1
        %s1065 = scalar_select %p1064, %s46, 1
        %s1066 = scalar_lea.vmem %s13, %s1065
        %p1067 = pneg %p402
        %p1068 = pneg %p399
        %s1069 = sand.u32 %s41, 1
        %s1070 = scalar_lea.sflag [#allocation3], %s1069
        %s1071 = sand.u32 %s415, 1
        %s1072 = smul.addr %s1071, 128
        %s1073 = scalar_lea.vmem [#allocation16], %s1072
        %p1074 = pneg %p428
        %p1075 = pneg %p425
        %p1076 = scmp.lt.s32.totalorder %s46, 1
        %s1077 = scalar_select %p1076, %s46, 1
        %s1078 = smul.addr %s1077, 2
        %s1079 = scalar_lea.vmem %s15, %s1078
        %p1080 = pneg %p454
        %p1081 = pneg %p451
        %s1082 = sand.u32 %s41, 1
        %s1083 = scalar_lea.sflag [#allocation6], %s1082
        %s1084 = sand.u32 %s467, 1
        %s1085 = smul.addr %s1084, 128
        %s1086 = scalar_lea.vmem [#allocation17], %s1085
        %p1087 = pneg %p480
        %p1088 = pneg %p477
        %p1089 = scmp.lt.s32.totalorder %s46, 1
        %s1090 = scalar_select %p1089, %s46, 1
        %s1091 = scalar_lea.vmem %s17, %s1090
        %p1092 = pneg %p506
        %p1093 = pneg %p503
        %p1094 = scmp.lt.s32.totalorder %s46, 1
        %s1095 = scalar_select %p1094, %s46, 1
        %s1096 = scalar_lea.vmem %s18, %s1095
        %p1097 = pneg %p532
        %p1098 = pneg %p529
        %p1099 = scmp.lt.s32.totalorder %s46, 1
        %s1100 = scalar_select %p1099, %s46, 1
        %s1101 = scalar_lea.vmem %s19, %s1100
        %p1102 = pneg %p558
        %p1103 = pneg %p555
        %p1104 = pneg %p584
        %p1105 = pneg %p581
        %s1106 = sand.u32 %s571, 1
        %s1107 = scalar_lea.sflag [#allocation4], %s1106
        %s1108 = sand.u32 %s571, 1
        %s1109 = smul.addr %s1108, 8
        %s1110 = scalar_lea.vmem [#allocation18], %s1109
        %p1111 = scmp.lt.s32.totalorder %s46, 1
        %s1112 = scalar_select %p1111, %s46, 1
        %s1113 = scalar_lea.vmem %s5, %s1112
        %p1114 = scmp.lt.s32.totalorder %s46, 1
        %s1115 = scalar_select %p1114, %s46, 1
        %s1116 = scalar_lea.vmem %s9, %s1115
        %p1117 = scmp.lt.s32.totalorder %s46, 1
        %s1118 = scalar_select %p1117, %s46, 1
        %s1119 = scalar_lea.vmem %s11, %s1118
        %p1120 = scmp.lt.s32.totalorder %s46, 1
        %s1121 = scalar_select %p1120, %s46, 1
        %s1122 = scalar_lea.vmem %s13, %s1121
        %p1123 = scmp.lt.s32.totalorder %s46, 1
        %s1124 = scalar_select %p1123, %s46, 1
        %s1125 = smul.addr %s1124, 2
        %s1126 = scalar_lea.vmem %s15, %s1125
        %p1127 = scmp.lt.s32.totalorder %s46, 1
        %s1128 = scalar_select %p1127, %s46, 1
        %s1129 = scalar_lea.vmem %s17, %s1128
        %p1130 = scmp.lt.s32.totalorder %s46, 1
        %s1131 = scalar_select %p1130, %s46, 1
        %s1132 = scalar_lea.vmem %s18, %s1131
        %p1133 = scmp.lt.s32.totalorder %s46, 1
        %s1134 = scalar_select %p1133, %s46, 1
        %s1135 = scalar_lea.vmem %s19, %s1134
        %p1137 = scmp.eq.s32.totalorder %s46, 0
        // Predicated region
        $region149: #{tpu_custom_call.1} parent=99 // pred_check
          %p1138 = pneg %p1137
        $region150: #{tpu_custom_call.1} parent=99 // pred_check_branch
          %1140 = sbr.rel (%p1138) target = $region152
        $region151: #{tpu_custom_call.1} parent=99 // pred_region
          %v1141 = vld [vmem:[%s889] sm:$0xff]
          %v1142 = vld [vmem:[#allocation7] sm:$0x1]
          %v1143 = vld [vmem:[#allocation8] sm:$0x1]
          %1144 = vadd.xlane.f32.xlu0 %v1141
          %v1145 = vpop.xlane.xlu0 %1144
          %v1146 = vrcp.pop 128.0
          %v1147 = vmul.f32 128.0, %v1146
          %v1148 = vsub.f32 1.0, %v1147
          %v1149 = vmul.f32 %v1146, %v1148
          %v1150 = vadd.f32 %v1146, %v1149
          %vm1151 = vweird.f32 %v1146
          %v1152 = vsel %vm1151, %v1146, %v1150
          %v1153 = vmul.f32 %v1145, %v1152
          %v1154 = vsub.f32 %v1141, %v1153
          %v1155 = vmul.f32 %v1154, %v1154
          %1156 = vadd.xlane.f32.xlu0 %v1155
          %v1157 = vpop.xlane.xlu0 %1156
          %v1158 = vmul.f32 %v1157, %v1152
          %v1159 = vadd.f32 %v1158, 1e-12
          %v1160 = vrsqrt.pop %v1159
          %v1161 = vmul.f32 %v1160, %v1159
          %v1162 = vmul.f32 %v1161, %v1160
          %v1163 = vmul.f32 0.5, %v1162
          %v1164 = vsub.f32 1.5, %v1163
          %v1165 = vmul.f32 %v1160, %v1164
          %vm1166 = vweird.f32 %v1159
          %vm1167 = vweird.f32 %v1160
          %vm1168 = vmor %vm1166, %vm1167
          %v1169 = vsel %vm1168, %v1160, %v1165
          %v1170 = vmul.f32 %v1154, %v1169
          %v1172 = vperm.slane %v1142, 0
          %v1174 = vmul.f32 %v1170, %v1172
          %v1176 = vperm.slane %v1143, 0
          %v1178 = vadd.f32 %v1174, %v1176
          %1179 = vst [vmem:[%s1110] sm:$0xff] %v1178
        $region152: #{tpu_custom_call.1} parent=99 // pred_fallthru
          _
        %v1180 = vld [vmem:[%s1110] sm:$0xff]
        %v1181 = vld [vmem:[%s898] sm:$0x1]
        %v1182 = vpack.c.bf16 %v1180, %v1180
        %v1183 = vld [vmem:[%s918] sm:$0xf]
        %v1184 = vld [vmem:[%s918 + $0x4] sm:$0xf]
        %v1185 = vld [vmem:[%s918 + $0x8] sm:$0xf]
        %v1186 = vld [vmem:[%s918 + $0xc] sm:$0xf]
        %v1187 = vld [vmem:[%s918 + $0x10] sm:$0xf]
        %v1188 = vld [vmem:[%s918 + $0x14] sm:$0xf]
        %v1189 = vld [vmem:[%s918 + $0x18] sm:$0xf]
        %v1190 = vld [vmem:[%s918 + $0x1c] sm:$0xf]
        %v1191 = vld [vmem:[%s918 + $0x20] sm:$0xf]
        %v1192 = vld [vmem:[%s918 + $0x24] sm:$0xf]
        %v1193 = vld [vmem:[%s918 + $0x28] sm:$0xf]
        %v1194 = vld [vmem:[%s918 + $0x2c] sm:$0xf]
        %v1195 = vld [vmem:[%s918 + $0x30] sm:$0xf]
        %v1196 = vld [vmem:[%s918 + $0x34] sm:$0xf]
        %v1197 = vld [vmem:[%s918 + $0x38] sm:$0xf]
        %v1198 = vld [vmem:[%s918 + $0x3c] sm:$0xf]
        %v1199 = vld [vmem:[%s1113] sm:$0x1]
        %v1201 = vperm.slane %v1199, 0
        %v1219 = vunpack.c.l.b16 %v1183
        %v1220 = vunpack.c.l.b16 %v1184
        %v1221 = vunpack.c.l.b16 %v1185
        %v1222 = vunpack.c.l.b16 %v1186
        %v1223 = vunpack.c.l.b16 %v1187
        %v1224 = vunpack.c.l.b16 %v1188
        %v1225 = vunpack.c.l.b16 %v1189
        %v1226 = vunpack.c.l.b16 %v1190
        %v1227 = vunpack.c.l.b16 %v1191
        %v1228 = vunpack.c.l.b16 %v1192
        %v1229 = vunpack.c.l.b16 %v1193
        %v1230 = vunpack.c.l.b16 %v1194
        %v1231 = vunpack.c.l.b16 %v1195
        %v1232 = vunpack.c.l.b16 %v1196
        %v1233 = vunpack.c.l.b16 %v1197
        %v1234 = vunpack.c.l.b16 %v1198
        %v1235 = vpack.c.b16 %v1220, %v1219
        %v1236 = vpack.c.b16 %v1222, %v1221
        %v1237 = vpack.c.b16 %v1224, %v1223
        %v1238 = vpack.c.b16 %v1226, %v1225
        %v1239 = vpack.c.b16 %v1228, %v1227
        %v1240 = vpack.c.b16 %v1230, %v1229
        %v1241 = vpack.c.b16 %v1232, %v1231
        %v1242 = vpack.c.b16 %v1234, %v1233
        %1251 = vmatpush.bf16.msra.mxu0 %v1242
        %1252 = vmatpush.bf16.msra.mxu0 %v1241
        %1253 = vmatpush.bf16.msra.mxu0 %v1240
        %1254 = vmatpush.bf16.msra.mxu0 %v1239
        %1255 = vmatpush.bf16.msra.mxu0 %v1238
        %1256 = vmatpush.bf16.msra.mxu0 %v1237
        %1257 = vmatpush.bf16.msra.mxu0 %v1236
        %1258 = vmatpush.bf16.msra.mxu0 %v1235
        %1259 = vmatmul.bf16.gmra.mxu0 %v1182
        %v1260 = vpop.f32.mrf.mxu0
        %v1261 = vadd.f32 %v1201, %v1260
        %v1262 = vpop.f32.mrf.mxu0
        %1263 = vdwg.mxu0
        %v1264 = vld [vmem:[%s928] sm:$0xf]
        %v1265 = vld [vmem:[%s928 + $0x4] sm:$0xf]
        %v1266 = vld [vmem:[%s928 + $0x8] sm:$0xf]
        %v1267 = vld [vmem:[%s928 + $0xc] sm:$0xf]
        %v1268 = vld [vmem:[%s928 + $0x10] sm:$0xf]
        %v1269 = vld [vmem:[%s928 + $0x14] sm:$0xf]
        %v1270 = vld [vmem:[%s928 + $0x18] sm:$0xf]
        %v1271 = vld [vmem:[%s928 + $0x1c] sm:$0xf]
        %v1272 = vld [vmem:[%s928 + $0x20] sm:$0xf]
        %v1273 = vld [vmem:[%s928 + $0x24] sm:$0xf]
        %v1274 = vld [vmem:[%s928 + $0x28] sm:$0xf]
        %v1275 = vld [vmem:[%s928 + $0x2c] sm:$0xf]
        %v1276 = vld [vmem:[%s928 + $0x30] sm:$0xf]
        %v1277 = vld [vmem:[%s928 + $0x34] sm:$0xf]
        %v1278 = vld [vmem:[%s928 + $0x38] sm:$0xf]
        %v1279 = vld [vmem:[%s928 + $0x3c] sm:$0xf]
        %v1280 = vld [vmem:[%s937] sm:$0x1]
        %v1282 = vperm.slane %v1280, 0
        %v1300 = vunpack.c.l.b16 %v1264
        %v1301 = vunpack.c.l.b16 %v1265
        %v1302 = vunpack.c.l.b16 %v1266
        %v1303 = vunpack.c.l.b16 %v1267
        %v1304 = vunpack.c.l.b16 %v1268
        %v1305 = vunpack.c.l.b16 %v1269
        %v1306 = vunpack.c.l.b16 %v1270
        %v1307 = vunpack.c.l.b16 %v1271
        %v1308 = vunpack.c.l.b16 %v1272
        %v1309 = vunpack.c.l.b16 %v1273
        %v1310 = vunpack.c.l.b16 %v1274
        %v1311 = vunpack.c.l.b16 %v1275
        %v1312 = vunpack.c.l.b16 %v1276
        %v1313 = vunpack.c.l.b16 %v1277
        %v1314 = vunpack.c.l.b16 %v1278
        %v1315 = vunpack.c.l.b16 %v1279
        %v1316 = vpack.c.b16 %v1301, %v1300
        %v1317 = vpack.c.b16 %v1303, %v1302
        %v1318 = vpack.c.b16 %v1305, %v1304
        %v1319 = vpack.c.b16 %v1307, %v1306
        %v1320 = vpack.c.b16 %v1309, %v1308
        %v1321 = vpack.c.b16 %v1311, %v1310
        %v1322 = vpack.c.b16 %v1313, %v1312
        %v1323 = vpack.c.b16 %v1315, %v1314
        %1332 = vmatpush.bf16.msra.mxu0 %v1323
        %1333 = vmatpush.bf16.msra.mxu0 %v1322
        %1334 = vmatpush.bf16.msra.mxu0 %v1321
        %1335 = vmatpush.bf16.msra.mxu0 %v1320
        %1336 = vmatpush.bf16.msra.mxu0 %v1319
        %1337 = vmatpush.bf16.msra.mxu0 %v1318
        %1338 = vmatpush.bf16.msra.mxu0 %v1317
        %1339 = vmatpush.bf16.msra.mxu0 %v1316
        %1340 = vmatmul.bf16.gmra.mxu0 %v1182
        %v1341 = vpop.f32.mrf.mxu0
        %v1342 = vadd.f32 %v1282, %v1341
        %v1343 = vpop.f32.mrf.mxu0
        %1344 = vdwg.mxu0
        %v1345 = vld [vmem:[%s947] sm:$0xf]
        %v1346 = vld [vmem:[%s947 + $0x4] sm:$0xf]
        %v1347 = vld [vmem:[%s947 + $0x8] sm:$0xf]
        %v1348 = vld [vmem:[%s947 + $0xc] sm:$0xf]
        %v1349 = vld [vmem:[%s947 + $0x10] sm:$0xf]
        %v1350 = vld [vmem:[%s947 + $0x14] sm:$0xf]
        %v1351 = vld [vmem:[%s947 + $0x18] sm:$0xf]
        %v1352 = vld [vmem:[%s947 + $0x1c] sm:$0xf]
        %v1353 = vld [vmem:[%s947 + $0x20] sm:$0xf]
        %v1354 = vld [vmem:[%s947 + $0x24] sm:$0xf]
        %v1355 = vld [vmem:[%s947 + $0x28] sm:$0xf]
        %v1356 = vld [vmem:[%s947 + $0x2c] sm:$0xf]
        %v1357 = vld [vmem:[%s947 + $0x30] sm:$0xf]
        %v1358 = vld [vmem:[%s947 + $0x34] sm:$0xf]
        %v1359 = vld [vmem:[%s947 + $0x38] sm:$0xf]
        %v1360 = vld [vmem:[%s947 + $0x3c] sm:$0xf]
        %v1361 = vld [vmem:[%s1116] sm:$0x1]
        %v1363 = vperm.slane %v1361, 0
        %v1381 = vunpack.c.l.b16 %v1345
        %v1382 = vunpack.c.l.b16 %v1346
        %v1383 = vunpack.c.l.b16 %v1347
        %v1384 = vunpack.c.l.b16 %v1348
        %v1385 = vunpack.c.l.b16 %v1349
        %v1386 = vunpack.c.l.b16 %v1350
        %v1387 = vunpack.c.l.b16 %v1351
        %v1388 = vunpack.c.l.b16 %v1352
        %v1389 = vunpack.c.l.b16 %v1353
        %v1390 = vunpack.c.l.b16 %v1354
        %v1391 = vunpack.c.l.b16 %v1355
        %v1392 = vunpack.c.l.b16 %v1356
        %v1393 = vunpack.c.l.b16 %v1357
        %v1394 = vunpack.c.l.b16 %v1358
        %v1395 = vunpack.c.l.b16 %v1359
        %v1396 = vunpack.c.l.b16 %v1360
        %v1397 = vpack.c.b16 %v1382, %v1381
        %v1398 = vpack.c.b16 %v1384, %v1383
        %v1399 = vpack.c.b16 %v1386, %v1385
        %v1400 = vpack.c.b16 %v1388, %v1387
        %v1401 = vpack.c.b16 %v1390, %v1389
        %v1402 = vpack.c.b16 %v1392, %v1391
        %v1403 = vpack.c.b16 %v1394, %v1393
        %v1404 = vpack.c.b16 %v1396, %v1395
        %1413 = vmatpush.bf16.msra.mxu0 %v1404
        %1414 = vmatpush.bf16.msra.mxu0 %v1403
        %1415 = vmatpush.bf16.msra.mxu0 %v1402
        %1416 = vmatpush.bf16.msra.mxu0 %v1401
        %1417 = vmatpush.bf16.msra.mxu0 %v1400
        %1418 = vmatpush.bf16.msra.mxu0 %v1399
        %1419 = vmatpush.bf16.msra.mxu0 %v1398
        %1420 = vmatpush.bf16.msra.mxu0 %v1397
        %1421 = vmatmul.bf16.gmra.mxu0 %v1182
        %v1422 = vpop.f32.mrf.mxu0
        %v1423 = vadd.f32 %v1363, %v1422
        %v1424 = vpop.f32.mrf.mxu0
        %1425 = vdwg.mxu0
        %v1426 = vmul.f32 %v1261, 0.17677669
        %v1427 = vpack.c.bf16 %v1426, %v1426
        %v1428 = vpack.c.bf16 %v1342, %v1342
        %v1429 = vpack.c.bf16 %v1423, %v1423
        %v1431 = vperm.slane %v1181, 0
        %vm1433 = vcmask 261120
        %v1435 = vsel %vm1433, %v1427, 0
        %v1438 = vsel %vm1433, %v1428, 0
        %1440 = vmatpush.bf16.xpose.msra.mxu0 0
        %1441 = vmatpush.bf16.xpose.msra.mxu0 0
        %1442 = vmatpush.bf16.xpose.msra.mxu0 0
        %1443 = vmatpush.bf16.xpose.msra.mxu0 0
        %1444 = vmatpush.bf16.xpose.msra.mxu0 0
        %1445 = vmatpush.bf16.xpose.msra.mxu0 0
        %1446 = vmatpush.bf16.xpose.msra.mxu0 0
        %1447 = vmatpush.bf16.xpose.msra.mxu0 %v1438
        %1448 = vmatmul.bf16.gmra.mxu0 %v1435
        %v1449 = vpop.f32.mrf.mxu0
        %v1450 = vadd.f32 %v1431, %v1449
        %v1451 = vpop.f32.mrf.mxu0
        %1452 = vdwg.mxu0
        %vm1453 = vcmask 64512
        %v1454 = vsel %vm1453, %v1450, -inf
        %1455 = vmax.xlane.f32.xlu0 %v1454
        %v1456 = vpop.xlane.xlu0 %1455
        %v1457 = vsub.f32 %v1450, %v1456
        %v1458 = vmul.f32 %v1457, 1.442695
        %v1459 = vpow.pop %v1458
        %v1460 = vsel %vm1453, %v1459, 0.0
        %1461 = vadd.xlane.f32.xlu0 %v1460
        %v1462 = vpop.xlane.xlu0 %1461
        %v1463 = vrcp.pop %v1462
        %v1464 = vmul.f32 %v1459, %v1463
        %v1465 = vpack.c.bf16 %v1464, %v1464
        %v1467 = vsel %vm1453, %v1465, 0
        %vm1469 = vcmask 1043456
        %v1471 = vsel %vm1469, %v1429, 0
        %1473 = vmatpush.bf16.msra.mxu0 0
        %1474 = vmatpush.bf16.msra.mxu0 0
        %1475 = vmatpush.bf16.msra.mxu0 0
        %1476 = vmatpush.bf16.msra.mxu0 0
        %1477 = vmatpush.bf16.msra.mxu0 0
        %1478 = vmatpush.bf16.msra.mxu0 0
        %1479 = vmatpush.bf16.msra.mxu0 0
        %1480 = vmatpush.bf16.msra.mxu0 %v1471
        %1481 = vmatmul.bf16.gmra.mxu0 %v1467
        %v1482 = vpop.f32.mrf.mxu0
        %v1483 = vadd.f32 0.0, %v1482
        %v1484 = vpop.f32.mrf.mxu0
        %1485 = vdwg.mxu0
        %1487 = vrot.lane.b32.xlu0 %v1427, 96
        %v1488 = vpop.permute.xlu0 %1487
        %1490 = vrot.lane.b32.xlu0 %v1428, 96
        %v1491 = vpop.permute.xlu0 %1490
        %v1493 = vsel %vm1433, %v1488, 0
        %v1496 = vsel %vm1433, %v1491, 0
        %1498 = vmatpush.bf16.xpose.msra.mxu0 0
        %1499 = vmatpush.bf16.xpose.msra.mxu0 0
        %1500 = vmatpush.bf16.xpose.msra.mxu0 0
        %1501 = vmatpush.bf16.xpose.msra.mxu0 0
        %1502 = vmatpush.bf16.xpose.msra.mxu0 0
        %1503 = vmatpush.bf16.xpose.msra.mxu0 0
        %1504 = vmatpush.bf16.xpose.msra.mxu0 0
        %1505 = vmatpush.bf16.xpose.msra.mxu0 %v1496
        %1506 = vmatmul.bf16.gmra.mxu0 %v1493
        %v1507 = vpop.f32.mrf.mxu0
        %v1508 = vadd.f32 %v1431, %v1507
        %v1509 = vpop.f32.mrf.mxu0
        %1510 = vdwg.mxu0
        %v1511 = vsel %vm1453, %v1508, -inf
        %1512 = vmax.xlane.f32.xlu0 %v1511
        %v1513 = vpop.xlane.xlu0 %1512
        %v1514 = vsub.f32 %v1508, %v1513
        %v1515 = vmul.f32 %v1514, 1.442695
        %v1516 = vpow.pop %v1515
        %v1517 = vsel %vm1453, %v1516, 0.0
        %1518 = vadd.xlane.f32.xlu0 %v1517
        %v1519 = vpop.xlane.xlu0 %1518
        %v1520 = vrcp.pop %v1519
        %v1521 = vmul.f32 %v1516, %v1520
        %v1522 = vpack.c.bf16 %v1521, %v1521
        %1524 = vrot.lane.b32.xlu0 %v1429, 96
        %v1525 = vpop.permute.xlu0 %1524
        %v1527 = vsel %vm1453, %v1522, 0
        %v1530 = vsel %vm1469, %v1525, 0
        %1532 = vmatpush.bf16.msra.mxu0 0
        %1533 = vmatpush.bf16.msra.mxu0 0
        %1534 = vmatpush.bf16.msra.mxu0 0
        %1535 = vmatpush.bf16.msra.mxu0 0
        %1536 = vmatpush.bf16.msra.mxu0 0
        %1537 = vmatpush.bf16.msra.mxu0 0
        %1538 = vmatpush.bf16.msra.mxu0 0
        %1539 = vmatpush.bf16.msra.mxu0 %v1530
        %1540 = vmatmul.bf16.gmra.mxu0 %v1527
        %v1541 = vpop.f32.mrf.mxu0
        %v1542 = vadd.f32 0.0, %v1541
        %v1543 = vpop.f32.mrf.mxu0
        %1544 = vdwg.mxu0
        %1545 = vrot.lane.b32.xlu0 %v1427, 64
        %v1546 = vpop.permute.xlu0 %1545
        %1547 = vrot.lane.b32.xlu0 %v1428, 64
        %v1548 = vpop.permute.xlu0 %1547
        %v1550 = vsel %vm1433, %v1546, 0
        %v1553 = vsel %vm1433, %v1548, 0
        %1555 = vmatpush.bf16.xpose.msra.mxu0 0
        %1556 = vmatpush.bf16.xpose.msra.mxu0 0
        %1557 = vmatpush.bf16.xpose.msra.mxu0 0
        %1558 = vmatpush.bf16.xpose.msra.mxu0 0
        %1559 = vmatpush.bf16.xpose.msra.mxu0 0
        %1560 = vmatpush.bf16.xpose.msra.mxu0 0
        %1561 = vmatpush.bf16.xpose.msra.mxu0 0
        %1562 = vmatpush.bf16.xpose.msra.mxu0 %v1553
        %1563 = vmatmul.bf16.gmra.mxu0 %v1550
        %v1564 = vpop.f32.mrf.mxu0
        %v1565 = vadd.f32 %v1431, %v1564
        %v1566 = vpop.f32.mrf.mxu0
        %1567 = vdwg.mxu0
        %v1568 = vsel %vm1453, %v1565, -inf
        %1569 = vmax.xlane.f32.xlu0 %v1568
        %v1570 = vpop.xlane.xlu0 %1569
        %v1571 = vsub.f32 %v1565, %v1570
        %v1572 = vmul.f32 %v1571, 1.442695
        %v1573 = vpow.pop %v1572
        %v1574 = vsel %vm1453, %v1573, 0.0
        %1575 = vadd.xlane.f32.xlu0 %v1574
        %v1576 = vpop.xlane.xlu0 %1575
        %v1577 = vrcp.pop %v1576
        %v1578 = vmul.f32 %v1573, %v1577
        %v1579 = vpack.c.bf16 %v1578, %v1578
        %1580 = vrot.lane.b32.xlu0 %v1429, 64
        %v1581 = vpop.permute.xlu0 %1580
        %v1583 = vsel %vm1453, %v1579, 0
        %v1586 = vsel %vm1469, %v1581, 0
        %1588 = vmatpush.bf16.msra.mxu0 0
        %1589 = vmatpush.bf16.msra.mxu0 0
        %1590 = vmatpush.bf16.msra.mxu0 0
        %1591 = vmatpush.bf16.msra.mxu0 0
        %1592 = vmatpush.bf16.msra.mxu0 0
        %1593 = vmatpush.bf16.msra.mxu0 0
        %1594 = vmatpush.bf16.msra.mxu0 0
        %1595 = vmatpush.bf16.msra.mxu0 %v1586
        %1596 = vmatmul.bf16.gmra.mxu0 %v1583
        %v1597 = vpop.f32.mrf.mxu0
        %v1598 = vadd.f32 0.0, %v1597
        %v1599 = vpop.f32.mrf.mxu0
        %1600 = vdwg.mxu0
        %1601 = vrot.lane.b32.xlu0 %v1427, 32
        %v1602 = vpop.permute.xlu0 %1601
        %1603 = vrot.lane.b32.xlu0 %v1428, 32
        %v1604 = vpop.permute.xlu0 %1603
        %v1606 = vsel %vm1433, %v1602, 0
        %v1609 = vsel %vm1433, %v1604, 0
        %1611 = vmatpush.bf16.xpose.msra.mxu0 0
        %1612 = vmatpush.bf16.xpose.msra.mxu0 0
        %1613 = vmatpush.bf16.xpose.msra.mxu0 0
        %1614 = vmatpush.bf16.xpose.msra.mxu0 0
        %1615 = vmatpush.bf16.xpose.msra.mxu0 0
        %1616 = vmatpush.bf16.xpose.msra.mxu0 0
        %1617 = vmatpush.bf16.xpose.msra.mxu0 0
        %1618 = vmatpush.bf16.xpose.msra.mxu0 %v1609
        %1619 = vmatmul.bf16.gmra.mxu0 %v1606
        %v1620 = vpop.f32.mrf.mxu0
        %v1621 = vadd.f32 %v1431, %v1620
        %v1622 = vpop.f32.mrf.mxu0
        %1623 = vdwg.mxu0
        %v1624 = vsel %vm1453, %v1621, -inf
        %1625 = vmax.xlane.f32.xlu0 %v1624
        %v1626 = vpop.xlane.xlu0 %1625
        %v1627 = vsub.f32 %v1621, %v1626
        %v1628 = vmul.f32 %v1627, 1.442695
        %v1629 = vpow.pop %v1628
        %v1630 = vsel %vm1453, %v1629, 0.0
        %1631 = vadd.xlane.f32.xlu0 %v1630
        %v1632 = vpop.xlane.xlu0 %1631
        %v1633 = vrcp.pop %v1632
        %v1634 = vmul.f32 %v1629, %v1633
        %v1635 = vpack.c.bf16 %v1634, %v1634
        %1636 = vrot.lane.b32.xlu0 %v1429, 32
        %v1637 = vpop.permute.xlu0 %1636
        %v1639 = vsel %vm1453, %v1635, 0
        %v1642 = vsel %vm1469, %v1637, 0
        %1644 = vmatpush.bf16.msra.mxu0 0
        %1645 = vmatpush.bf16.msra.mxu0 0
        %1646 = vmatpush.bf16.msra.mxu0 0
        %1647 = vmatpush.bf16.msra.mxu0 0
        %1648 = vmatpush.bf16.msra.mxu0 0
        %1649 = vmatpush.bf16.msra.mxu0 0
        %1650 = vmatpush.bf16.msra.mxu0 0
        %1651 = vmatpush.bf16.msra.mxu0 %v1642
        %1652 = vmatmul.bf16.gmra.mxu0 %v1639
        %v1653 = vpop.f32.mrf.mxu0
        %v1654 = vadd.f32 0.0, %v1653
        %v1655 = vpop.f32.mrf.mxu0
        %1656 = vdwg.mxu0
        %1658 = vrot.lane.b32.xlu0 %v1542, 32
        %v1659 = vpop.permute.xlu0 %1658
        %1662 = vrot.lane.b32.xlu0 %v1598, 64
        %v1663 = vpop.permute.xlu0 %1662
        %1666 = vrot.lane.b32.xlu0 %v1654, 96
        %v1667 = vpop.permute.xlu0 %1666
        %v1669 = vsel %vm1433, %v1483, %v1659
        %vm1670 = vcmask 523264
        %v1671 = vsel %vm1670, %v1669, %v1663
        %vm1672 = vcmask 785408
        %v1673 = vsel %vm1672, %v1671, %v1667
        %v1674 = vpack.c.bf16 %v1673, %v1673
        %v1675 = vld [vmem:[%s957] sm:$0xf]
        %v1676 = vld [vmem:[%s957 + $0x4] sm:$0xf]
        %v1677 = vld [vmem:[%s957 + $0x8] sm:$0xf]
        %v1678 = vld [vmem:[%s957 + $0xc] sm:$0xf]
        %v1679 = vld [vmem:[%s957 + $0x10] sm:$0xf]
        %v1680 = vld [vmem:[%s957 + $0x14] sm:$0xf]
        %v1681 = vld [vmem:[%s957 + $0x18] sm:$0xf]
        %v1682 = vld [vmem:[%s957 + $0x1c] sm:$0xf]
        %v1683 = vld [vmem:[%s957 + $0x20] sm:$0xf]
        %v1684 = vld [vmem:[%s957 + $0x24] sm:$0xf]
        %v1685 = vld [vmem:[%s957 + $0x28] sm:$0xf]
        %v1686 = vld [vmem:[%s957 + $0x2c] sm:$0xf]
        %v1687 = vld [vmem:[%s957 + $0x30] sm:$0xf]
        %v1688 = vld [vmem:[%s957 + $0x34] sm:$0xf]
        %v1689 = vld [vmem:[%s957 + $0x38] sm:$0xf]
        %v1690 = vld [vmem:[%s957 + $0x3c] sm:$0xf]
        %v1691 = vld [vmem:[%s1119] sm:$0x1]
        %v1693 = vperm.slane %v1691, 0
        %v1711 = vunpack.c.l.b16 %v1675
        %v1712 = vunpack.c.l.b16 %v1676
        %v1713 = vunpack.c.l.b16 %v1677
        %v1714 = vunpack.c.l.b16 %v1678
        %v1715 = vunpack.c.l.b16 %v1679
        %v1716 = vunpack.c.l.b16 %v1680
        %v1717 = vunpack.c.l.b16 %v1681
        %v1718 = vunpack.c.l.b16 %v1682
        %v1719 = vunpack.c.l.b16 %v1683
        %v1720 = vunpack.c.l.b16 %v1684
        %v1721 = vunpack.c.l.b16 %v1685
        %v1722 = vunpack.c.l.b16 %v1686
        %v1723 = vunpack.c.l.b16 %v1687
        %v1724 = vunpack.c.l.b16 %v1688
        %v1725 = vunpack.c.l.b16 %v1689
        %v1726 = vunpack.c.l.b16 %v1690
        %v1727 = vpack.c.b16 %v1712, %v1711
        %v1728 = vpack.c.b16 %v1714, %v1713
        %v1729 = vpack.c.b16 %v1716, %v1715
        %v1730 = vpack.c.b16 %v1718, %v1717
        %v1731 = vpack.c.b16 %v1720, %v1719
        %v1732 = vpack.c.b16 %v1722, %v1721
        %v1733 = vpack.c.b16 %v1724, %v1723
        %v1734 = vpack.c.b16 %v1726, %v1725
        %1743 = vmatpush.bf16.msra.mxu0 %v1734
        %1744 = vmatpush.bf16.msra.mxu0 %v1733
        %1745 = vmatpush.bf16.msra.mxu0 %v1732
        %1746 = vmatpush.bf16.msra.mxu0 %v1731
        %1747 = vmatpush.bf16.msra.mxu0 %v1730
        %1748 = vmatpush.bf16.msra.mxu0 %v1729
        %1749 = vmatpush.bf16.msra.mxu0 %v1728
        %1750 = vmatpush.bf16.msra.mxu0 %v1727
        %1751 = vmatmul.bf16.gmra.mxu0 %v1674
        %v1752 = vpop.f32.mrf.mxu0
        %v1753 = vadd.f32 %v1693, %v1752
        %v1754 = vpop.f32.mrf.mxu0
        %1755 = vdwg.mxu0
        %v1756 = vadd.f32 %v1180, %v1753
        %v1757 = vld [vmem:[%s966] sm:$0x1]
        %v1758 = vld [vmem:[%s1122] sm:$0x1]
        %1759 = vadd.xlane.f32.xlu0 %v1756
        %v1760 = vpop.xlane.xlu0 %1759
        %v1761 = vrcp.pop 128.0
        %v1762 = vmul.f32 128.0, %v1761
        %v1763 = vsub.f32 1.0, %v1762
        %v1764 = vmul.f32 %v1761, %v1763
        %v1765 = vadd.f32 %v1761, %v1764
        %vm1766 = vweird.f32 %v1761
        %v1767 = vsel %vm1766, %v1761, %v1765
        %v1768 = vmul.f32 %v1760, %v1767
        %v1769 = vsub.f32 %v1756, %v1768
        %v1770 = vmul.f32 %v1769, %v1769
        %1771 = vadd.xlane.f32.xlu0 %v1770
        %v1772 = vpop.xlane.xlu0 %1771
        %v1773 = vmul.f32 %v1772, %v1767
        %v1774 = vadd.f32 %v1773, 1e-12
        %v1775 = vrsqrt.pop %v1774
        %v1776 = vmul.f32 %v1775, %v1774
        %v1777 = vmul.f32 %v1776, %v1775
        %v1778 = vmul.f32 0.5, %v1777
        %v1779 = vsub.f32 1.5, %v1778
        %v1780 = vmul.f32 %v1775, %v1779
        %vm1781 = vweird.f32 %v1774
        %vm1782 = vweird.f32 %v1775
        %vm1783 = vmor %vm1781, %vm1782
        %v1784 = vsel %vm1783, %v1775, %v1780
        %v1785 = vmul.f32 %v1769, %v1784
        %v1787 = vperm.slane %v1757, 0
        %v1789 = vmul.f32 %v1785, %v1787
        %v1791 = vperm.slane %v1758, 0
        %v1793 = vadd.f32 %v1789, %v1791
        %v1794 = vpack.c.bf16 %v1793, %v1793
        %v1795 = vld [vmem:[%s976] sm:$0xff]
        %v1796 = vld [vmem:[%s976 + $0x8] sm:$0xff]
        %v1797 = vld [vmem:[%s976 + $0x10] sm:$0xff]
        %v1798 = vld [vmem:[%s976 + $0x18] sm:$0xff]
        %v1799 = vld [vmem:[%s976 + $0x20] sm:$0xff]
        %v1800 = vld [vmem:[%s976 + $0x28] sm:$0xff]
        %v1801 = vld [vmem:[%s976 + $0x30] sm:$0xff]
        %v1802 = vld [vmem:[%s976 + $0x38] sm:$0xff]
        %v1803 = vld [vmem:[%s976 + $0x40] sm:$0xff]
        %v1804 = vld [vmem:[%s976 + $0x48] sm:$0xff]
        %v1805 = vld [vmem:[%s976 + $0x50] sm:$0xff]
        %v1806 = vld [vmem:[%s976 + $0x58] sm:$0xff]
        %v1807 = vld [vmem:[%s976 + $0x60] sm:$0xff]
        %v1808 = vld [vmem:[%s976 + $0x68] sm:$0xff]
        %v1809 = vld [vmem:[%s976 + $0x70] sm:$0xff]
        %v1810 = vld [vmem:[%s976 + $0x78] sm:$0xff]
        %v1811 = vld [vmem:[%s1126] sm:$0x3]
        %v1813 = vperm.slane %v1811, 0
        %v1814 = vperm.slane %v1811, 1
        %v1833 = vunpack.c.l.b16 %v1795
        %v1834 = vunpack.c.h.b16 %v1795
        %v1835 = vunpack.c.l.b16 %v1796
        %v1836 = vunpack.c.h.b16 %v1796
        %v1837 = vunpack.c.l.b16 %v1797
        %v1838 = vunpack.c.h.b16 %v1797
        %v1839 = vunpack.c.l.b16 %v1798
        %v1840 = vunpack.c.h.b16 %v1798
        %v1841 = vunpack.c.l.b16 %v1799
        %v1842 = vunpack.c.h.b16 %v1799
        %v1843 = vunpack.c.l.b16 %v1800
        %v1844 = vunpack.c.h.b16 %v1800
        %v1845 = vunpack.c.l.b16 %v1801
        %v1846 = vunpack.c.h.b16 %v1801
        %v1847 = vunpack.c.l.b16 %v1802
        %v1848 = vunpack.c.h.b16 %v1802
        %v1849 = vunpack.c.l.b16 %v1803
        %v1850 = vunpack.c.h.b16 %v1803
        %v1851 = vunpack.c.l.b16 %v1804
        %v1852 = vunpack.c.h.b16 %v1804
        %v1853 = vunpack.c.l.b16 %v1805
        %v1854 = vunpack.c.h.b16 %v1805
        %v1855 = vunpack.c.l.b16 %v1806
        %v1856 = vunpack.c.h.b16 %v1806
        %v1857 = vunpack.c.l.b16 %v1807
        %v1858 = vunpack.c.h.b16 %v1807
        %v1859 = vunpack.c.l.b16 %v1808
        %v1860 = vunpack.c.h.b16 %v1808
        %v1861 = vunpack.c.l.b16 %v1809
        %v1862 = vunpack.c.h.b16 %v1809
        %v1863 = vunpack.c.l.b16 %v1810
        %v1864 = vunpack.c.h.b16 %v1810
        %v1865 = vpack.c.b16 %v1835, %v1833
        %v1866 = vpack.c.b16 %v1836, %v1834
        %v1867 = vpack.c.b16 %v1839, %v1837
        %v1868 = vpack.c.b16 %v1840, %v1838
        %v1869 = vpack.c.b16 %v1843, %v1841
        %v1870 = vpack.c.b16 %v1844, %v1842
        %v1871 = vpack.c.b16 %v1847, %v1845
        %v1872 = vpack.c.b16 %v1848, %v1846
        %v1873 = vpack.c.b16 %v1851, %v1849
        %v1874 = vpack.c.b16 %v1852, %v1850
        %v1875 = vpack.c.b16 %v1855, %v1853
        %v1876 = vpack.c.b16 %v1856, %v1854
        %v1877 = vpack.c.b16 %v1859, %v1857
        %v1878 = vpack.c.b16 %v1860, %v1858
        %v1879 = vpack.c.b16 %v1863, %v1861
        %v1880 = vpack.c.b16 %v1864, %v1862
        %1897 = vmatpush.bf16.msra.mxu0 %v1879
        %1898 = vmatpush.bf16.msra.mxu0 %v1877
        %1899 = vmatpush.bf16.msra.mxu0 %v1875
        %1900 = vmatpush.bf16.msra.mxu0 %v1873
        %1901 = vmatpush.bf16.msra.mxu0 %v1871
        %1902 = vmatpush.bf16.msra.mxu0 %v1869
        %1903 = vmatpush.bf16.msra.mxu0 %v1867
        %1904 = vmatpush.bf16.msra.mxu0 %v1865
        %1905 = vmatmul.bf16.gmra.mxu0 %v1794
        %v1906 = vpop.f32.mrf.mxu0
        %v1907 = vadd.f32 %v1813, %v1906
        %v1908 = vpop.f32.mrf.mxu0
        %1909 = vdwg.mxu0
        %1910 = vmatpush.bf16.msra.mxu0 %v1880
        %1911 = vmatpush.bf16.msra.mxu0 %v1878
        %1912 = vmatpush.bf16.msra.mxu0 %v1876
        %1913 = vmatpush.bf16.msra.mxu0 %v1874
        %1914 = vmatpush.bf16.msra.mxu0 %v1872
        %1915 = vmatpush.bf16.msra.mxu0 %v1870
        %1916 = vmatpush.bf16.msra.mxu0 %v1868
        %1917 = vmatpush.bf16.msra.mxu0 %v1866
        %1918 = vmatmul.bf16.gmra.mxu0 %v1794
        %v1919 = vpop.f32.mrf.mxu0
        %v1920 = vadd.f32 %v1814, %v1919
        %v1921 = vpop.f32.mrf.mxu0
        %1922 = vdwg.mxu0
        %v1923 = vmul.f32 %v1907, %v1907
        %v1924 = vmul.f32 %v1920, %v1920
        %v1925 = vmul.f32 %v1907, %v1923
        %v1926 = vmul.f32 %v1920, %v1924
        %v1927 = vmul.f32 %v1925, 0.044715
        %v1928 = vmul.f32 %v1926, 0.044715
        %v1929 = vadd.f32 %v1907, %v1927
        %v1930 = vadd.f32 %v1920, %v1928
        %v1931 = vmul.f32 %v1929, 0.7978846
        %v1932 = vmul.f32 %v1930, 0.7978846
        %v1933 = vtanh.pop %v1931
        %v1934 = vtanh.pop %v1932
        %v1935 = vadd.f32 %v1933, 1.0
        %v1936 = vadd.f32 %v1934, 1.0
        %v1937 = vmul.f32 %v1935, 0.5
        %v1938 = vmul.f32 %v1936, 0.5
        %v1939 = vmul.f32 %v1907, %v1937
        %v1940 = vmul.f32 %v1920, %v1938
        %v1941 = vpack.c.bf16 %v1939, %v1939
        %v1942 = vpack.c.bf16 %v1940, %v1940
        %v1943 = vld [vmem:[%s986] sm:$0xf]
        %v1944 = vld [vmem:[%s986 + $0x4] sm:$0xf]
        %v1945 = vld [vmem:[%s986 + $0x8] sm:$0xf]
        %v1946 = vld [vmem:[%s986 + $0xc] sm:$0xf]
        %v1947 = vld [vmem:[%s986 + $0x10] sm:$0xf]
        %v1948 = vld [vmem:[%s986 + $0x14] sm:$0xf]
        %v1949 = vld [vmem:[%s986 + $0x18] sm:$0xf]
        %v1950 = vld [vmem:[%s986 + $0x1c] sm:$0xf]
        %v1951 = vld [vmem:[%s986 + $0x20] sm:$0xf]
        %v1952 = vld [vmem:[%s986 + $0x24] sm:$0xf]
        %v1953 = vld [vmem:[%s986 + $0x28] sm:$0xf]
        %v1954 = vld [vmem:[%s986 + $0x2c] sm:$0xf]
        %v1955 = vld [vmem:[%s986 + $0x30] sm:$0xf]
        %v1956 = vld [vmem:[%s986 + $0x34] sm:$0xf]
        %v1957 = vld [vmem:[%s986 + $0x38] sm:$0xf]
        %v1958 = vld [vmem:[%s986 + $0x3c] sm:$0xf]
        %v1959 = vld [vmem:[%s986 + $0x40] sm:$0xf]
        %v1960 = vld [vmem:[%s986 + $0x44] sm:$0xf]
        %v1961 = vld [vmem:[%s986 + $0x48] sm:$0xf]
        %v1962 = vld [vmem:[%s986 + $0x4c] sm:$0xf]
        %v1963 = vld [vmem:[%s986 + $0x50] sm:$0xf]
        %v1964 = vld [vmem:[%s986 + $0x54] sm:$0xf]
        %v1965 = vld [vmem:[%s986 + $0x58] sm:$0xf]
        %v1966 = vld [vmem:[%s986 + $0x5c] sm:$0xf]
        %v1967 = vld [vmem:[%s986 + $0x60] sm:$0xf]
        %v1968 = vld [vmem:[%s986 + $0x64] sm:$0xf]
        %v1969 = vld [vmem:[%s986 + $0x68] sm:$0xf]
        %v1970 = vld [vmem:[%s986 + $0x6c] sm:$0xf]
        %v1971 = vld [vmem:[%s986 + $0x70] sm:$0xf]
        %v1972 = vld [vmem:[%s986 + $0x74] sm:$0xf]
        %v1973 = vld [vmem:[%s986 + $0x78] sm:$0xf]
        %v1974 = vld [vmem:[%s986 + $0x7c] sm:$0xf]
        %v1975 = vld [vmem:[%s1129] sm:$0x1]
        %v1977 = vperm.slane %v1975, 0
        %v2011 = vunpack.c.l.b16 %v1943
        %v2012 = vunpack.c.l.b16 %v1944
        %v2013 = vunpack.c.l.b16 %v1945
        %v2014 = vunpack.c.l.b16 %v1946
        %v2015 = vunpack.c.l.b16 %v1947
        %v2016 = vunpack.c.l.b16 %v1948
        %v2017 = vunpack.c.l.b16 %v1949
        %v2018 = vunpack.c.l.b16 %v1950
        %v2019 = vunpack.c.l.b16 %v1951
        %v2020 = vunpack.c.l.b16 %v1952
        %v2021 = vunpack.c.l.b16 %v1953
        %v2022 = vunpack.c.l.b16 %v1954
        %v2023 = vunpack.c.l.b16 %v1955
        %v2024 = vunpack.c.l.b16 %v1956
        %v2025 = vunpack.c.l.b16 %v1957
        %v2026 = vunpack.c.l.b16 %v1958
        %v2027 = vunpack.c.l.b16 %v1959
        %v2028 = vunpack.c.l.b16 %v1960
        %v2029 = vunpack.c.l.b16 %v1961
        %v2030 = vunpack.c.l.b16 %v1962
        %v2031 = vunpack.c.l.b16 %v1963
        %v2032 = vunpack.c.l.b16 %v1964
        %v2033 = vunpack.c.l.b16 %v1965
        %v2034 = vunpack.c.l.b16 %v1966
        %v2035 = vunpack.c.l.b16 %v1967
        %v2036 = vunpack.c.l.b16 %v1968
        %v2037 = vunpack.c.l.b16 %v1969
        %v2038 = vunpack.c.l.b16 %v1970
        %v2039 = vunpack.c.l.b16 %v1971
        %v2040 = vunpack.c.l.b16 %v1972
        %v2041 = vunpack.c.l.b16 %v1973
        %v2042 = vunpack.c.l.b16 %v1974
        %v2043 = vpack.c.b16 %v2012, %v2011
        %v2044 = vpack.c.b16 %v2014, %v2013
        %v2045 = vpack.c.b16 %v2016, %v2015
        %v2046 = vpack.c.b16 %v2018, %v2017
        %v2047 = vpack.c.b16 %v2020, %v2019
        %v2048 = vpack.c.b16 %v2022, %v2021
        %v2049 = vpack.c.b16 %v2024, %v2023
        %v2050 = vpack.c.b16 %v2026, %v2025
        %v2051 = vpack.c.b16 %v2028, %v2027
        %v2052 = vpack.c.b16 %v2030, %v2029
        %v2053 = vpack.c.b16 %v2032, %v2031
        %v2054 = vpack.c.b16 %v2034, %v2033
        %v2055 = vpack.c.b16 %v2036, %v2035
        %v2056 = vpack.c.b16 %v2038, %v2037
        %v2057 = vpack.c.b16 %v2040, %v2039
        %v2058 = vpack.c.b16 %v2042, %v2041
        %2075 = vmatpush.bf16.msra.mxu0 %v2050
        %2076 = vmatpush.bf16.msra.mxu0 %v2049
        %2077 = vmatpush.bf16.msra.mxu0 %v2048
        %2078 = vmatpush.bf16.msra.mxu0 %v2047
        %2079 = vmatpush.bf16.msra.mxu0 %v2046
        %2080 = vmatpush.bf16.msra.mxu0 %v2045
        %2081 = vmatpush.bf16.msra.mxu0 %v2044
        %2082 = vmatpush.bf16.msra.mxu0 %v2043
        %2083 = vmatmul.bf16.gmra.mxu0 %v1941
        %v2084 = vpop.f32.mrf.mxu0
        %v2085 = vadd.f32 %v1977, %v2084
        %v2086 = vpop.f32.mrf.mxu0
        %2087 = vdwg.mxu0
        %2088 = vmatpush.bf16.msra.mxu0 %v2058
        %2089 = vmatpush.bf16.msra.mxu0 %v2057
        %2090 = vmatpush.bf16.msra.mxu0 %v2056
        %2091 = vmatpush.bf16.msra.mxu0 %v2055
        %2092 = vmatpush.bf16.msra.mxu0 %v2054
        %2093 = vmatpush.bf16.msra.mxu0 %v2053
        %2094 = vmatpush.bf16.msra.mxu0 %v2052
        %2095 = vmatpush.bf16.msra.mxu0 %v2051
        %2096 = vmatmul.bf16.gmra.mxu0 %v1942
        %v2097 = vpop.f32.mrf.mxu0
        %v2098 = vadd.f32 %v2085, %v2097
        %v2099 = vpop.f32.mrf.mxu0
        %2100 = vdwg.mxu0
        %v2101 = vadd.f32 %v1793, %v2098
        %v2102 = vld [vmem:[%s1132] sm:$0x1]
        %v2103 = vld [vmem:[%s1135] sm:$0x1]
        %2104 = vadd.xlane.f32.xlu0 %v2101
        %v2105 = vpop.xlane.xlu0 %2104
        %v2106 = vmul.f32 %v2105, %v1767
        %v2107 = vsub.f32 %v2101, %v2106
        %v2108 = vmul.f32 %v2107, %v2107
        %2109 = vadd.xlane.f32.xlu0 %v2108
        %v2110 = vpop.xlane.xlu0 %2109
        %v2111 = vmul.f32 %v2110, %v1767
        %v2112 = vadd.f32 %v2111, 1e-12
        %v2113 = vrsqrt.pop %v2112
        %v2114 = vmul.f32 %v2113, %v2112
        %v2115 = vmul.f32 %v2114, %v2113
        %v2116 = vmul.f32 0.5, %v2115
        %v2117 = vsub.f32 1.5, %v2116
        %v2118 = vmul.f32 %v2113, %v2117
        %vm2119 = vweird.f32 %v2112
        %vm2120 = vweird.f32 %v2113
        %vm2121 = vmor %vm2119, %vm2120
        %v2122 = vsel %vm2121, %v2113, %v2118
        %v2123 = vmul.f32 %v2107, %v2122
        %v2125 = vperm.slane %v2102, 0
        %v2127 = vmul.f32 %v2123, %v2125
        %v2129 = vperm.slane %v2103, 0
        %v2131 = vadd.f32 %v2127, %v2129
        %2132 = vst [vmem:[%s1110] sm:$0xff] %v2131
        %s2133 = sand.u32 %s571, 1
        %s2134 = scalar_lea.sflag [#allocation4], %s2133
        %s2135 = sand.u32 %s571, 1
        %s2136 = smul.addr %s2135, 8
        %s2137 = scalar_lea.vmem [#allocation18], %s2136
        // Predicated region
        $region153: #{tpu_custom_call.1} parent=99 // pred_check
          %p2138 = pneg %p581
        $region154: #{tpu_custom_call.1} parent=99 // pred_check_branch
          %2140 = sbr.rel (%p2138) target = $region156
        $region155: #{tpu_custom_call.1} parent=99 // pred_region
          %2142 = vsyncadd %s2134, 0
          %s2143 = smul.addr %s45, 8
          %s2144 = scalar_lea.hbm %s20, %s2143
          %s2146 = sshll.u32 %s2137, 4
          %s2147 = int_to_ptr.vmem [resolvable:$true] %s2146
          %s2148 = sshll.u32 %s2144, 4
          %s2149 = int_to_ptr.hbm [resolvable:$true] %s2148
          %2151 = dma.vmem_to_hbm [thread:$0]  %s2147, 128, %s2149, %s2134
        $region156: #{tpu_custom_call.1} parent=99 // pred_fallthru
          _
      $region100: #{tpu_custom_call.1} parent=5 // pred_fallthru
        _
      %p2152 = scmp.le.s32.totalorder 2, %s36
      // Predicated region
      $region157: #{tpu_custom_call.1} parent=5 // pred_check
        %p2153 = pneg %p2152
      $region158: #{tpu_custom_call.1} parent=5 // pred_check_branch
        %2155 = sbr.rel (%p2153) target = $region160
      $region159: #{tpu_custom_call.1} parent=5 // pred_region
        %s2156 = ssub.s32 %s36, 2
        // Predicated region
        $region161: #{tpu_custom_call.1} parent=159 // pred_check
          %p2157 = pneg %p587
        $region162: #{tpu_custom_call.1} parent=159 // pred_check_branch
          %2159 = sbr.rel (%p2157) target = $region164
        $region163: #{tpu_custom_call.1} parent=159 // pred_region
          %s2160 = sand.u32 %s572, 1
          %s2161 = scalar_lea.sflag [#allocation4], %s2160
          %s2162 = sand.u32 %s572, 1
          %s2163 = smul.addr %s2162, 8
          %s2164 = scalar_lea.vmem [#allocation18], %s2163
          %2166 = dma.done %s2161, 128
        $region164: #{tpu_custom_call.1} parent=159 // pred_fallthru
          _
      $region160: #{tpu_custom_call.1} parent=5 // pred_fallthru
        _
    $region6: #{tpu_custom_call.1} parent=1 // loop_footer
      %s40 = sadd.s32 1, %s36
    $region7: #{tpu_custom_call.1} parent=1 // loop_footer_branch
      %35 = sbr.rel target = $region3
    $region8: #{tpu_custom_call.1} parent=1 // loop_exit
      _
    %2167 = vsyncpa [#allocation3], 1
    %s2168 = scalar_lea.sflag [#allocation3], 1
    %2169 = vsyncpa %s2168, 1
    %2170 = vsyncpa [#allocation6], 1
    %s2171 = scalar_lea.sflag [#allocation6], 1
    %2172 = vsyncpa %s2171, 1
    %2173 = vsyncpa [#allocation9], 1
    %2174 = vsyncpa [#allocation4], 1
    %s2175 = scalar_lea.sflag [#allocation4], 1
    %2176 = vsyncpa %s2175, 1

</llo_original>
